<compile_context>
chip_gen: v6e
topology: v6e:2x2x1
jax: 0.10.0
libtpu: 0.0.40
codegen_flags: <defaults>
</compile_context>

<pallas_src>
import math
import functools

import jax
import jax.numpy as jnp
from jax.experimental import pallas as pl
from jax.experimental.pallas import tpu as pltpu


# ----------------------------- in-kernel helpers -----------------------------

def _layernorm(x, g, b, eps=1e-6):
    # BERT4Rec LayerNorm: g * (x - mean) / (std + eps) + b, unbiased std.
    mean = jnp.mean(x, axis=-1, keepdims=True)
    var = jnp.sum((x - mean) ** 2, axis=-1, keepdims=True) / (x.shape[-1] - 1)
    inv = pl.reciprocal(jnp.sqrt(var) + eps, approx=True)
    return g * (x - mean) * inv + b


def _gelu(x):
    # BERT4Rec GELU (tanh approximation), kept in f32.
    return 0.5 * x * (1.0 + jnp.tanh(
        math.sqrt(2.0 / math.pi) * (x + 0.044715 * x * x * x)))


# --------------------------------- kernels -----------------------------------

def _encoder_kernel(emb_ref,                   # (bt, L, H) f32 tok+pos embedding
                    ids_ref,                   # (bt, 1, L) int32 (key mask)
                    eg_ref, eb_ref,            # (1, H) embedding LayerNorm
                    wqkv_ref,                  # (1, H, 3D) bf16
                    wo_ref,                    # (1, D, H) bf16
                    w1_ref,                    # (1, H, F) bf16
                    w2_ref,                    # (1, F, H) bf16
                    small_ref,                 # (1, 8, PMAX) f32 packed params
                    out_ref,                   # (bt, L, H) f32 residual stream
                    *, num_heads, head_size):
    li = pl.program_id(1)                      # transformer layer index
    bt, L, H = emb_ref.shape
    F = w1_ref.shape[2]
    D = num_heads * head_size
    bf16 = jnp.bfloat16

    # ---------- layer 0: embedding LayerNorm into resident residual stream --
    @pl.when(li == 0)
    def _():
        emb = emb_ref[...].reshape(bt * L, H)
        out_ref[...] = _layernorm(emb, eg_ref[...], eb_ref[...]).reshape(bt, L, H)
        # TODO(synk): dropout after the embedding LayerNorm is identity (eval).

    # ---------- unpack this layer's small params (one DMA per layer) --------
    sp = small_ref[0]                                        # (8, PMAX) f32
    bqkv = sp[0:1, :3 * D]
    bo = sp[1:2, :H]
    g1, b1 = sp[2:3, :H], sp[3:4, :H]
    g2, b2 = sp[4:5, :H], sp[5:6, :H]
    f1 = sp[6:7, :F]
    f2 = sp[7:8, :H]

    # additive key mask (padding id == 0), built ONCE and reused by all heads
    neg = jnp.where(ids_ref[...] > 0, 0.0, -1e9).astype(jnp.float32)  # (bt,1,L)
    neg = jnp.broadcast_to(neg, (bt, L, L))

    x = out_ref[...].reshape(bt * L, H)        # residual stream (resident, f32)

    # ---------------- multi-head attention (pre-norm, residual) -------------
    h = _layernorm(x, g1, b1)
    qkv = jnp.dot(h.astype(bf16), wqkv_ref[0],
                  preferred_element_type=jnp.float32) + bqkv          # (bt*L,3D)
    qkv = qkv.astype(bf16)                     # cast once; head slices are bf16

    scale = 1.0 / math.sqrt(head_size)
    heads = []
    # TODO(synk): fold heads into the dot_general batch dims
    # ('bqhd,bkhd->bhqk') once Mosaic multi-batch dot_general / einshape
    # relayout is verified on the target jaxlib; the short unrolled loop below
    # sticks to single-batch einsums that lower cleanly today.
    for hh in range(num_heads):
        s0 = hh * head_size
        q = qkv[:, s0:s0 + head_size].reshape(bt, L, head_size)
        k = qkv[:, D + s0:D + s0 + head_size].reshape(bt, L, head_size)
        v = qkv[:, 2 * D + s0:2 * D + s0 + head_size].reshape(bt, L, head_size)
        s = jnp.einsum('bqd,bkd->bqk', q, k,
                       preferred_element_type=jnp.float32) * scale + neg
        s = s - jnp.max(s, axis=-1, keepdims=True)
        p = jnp.exp(s)
        p = p * pl.reciprocal(jnp.sum(p, axis=-1, keepdims=True), approx=True)
        o = jnp.einsum('bqk,bkd->bqd', p.astype(bf16), v,
                       preferred_element_type=jnp.float32)
        heads.append(o.astype(bf16))           # bf16 partials (feed wo matmul)
    attn = jnp.concatenate(heads, axis=-1).reshape(bt * L, D)
    attn_out = jnp.dot(attn, wo_ref[0], preferred_element_type=jnp.float32) + bo
    x = x + attn_out                                   # residual (dropout = id)

    # ---------------- position-wise feed-forward (pre-norm, residual) -------
    h2 = _layernorm(x, g2, b2)
    f = _gelu(jnp.dot(h2.astype(bf16), w1_ref[0],
                      preferred_element_type=jnp.float32) + f1)
    f = jnp.dot(f.astype(bf16), w2_ref[0],
                preferred_element_type=jnp.float32) + f2
    out_ref[...] = (x + f).reshape(bt, L, H)           # block dropout = identity


def _head_kernel(x_ref, w_ref, b_ref, tokT_ref, ob_ref, out_ref, h_scr):
    # Row- and vocab-tiled head: scores = GELU(x @ W + b) @ tok_wT + bias.
    # GELU(Linear(x)) is computed once per ROW tile (vocab step 0) and reused.
    @pl.when(pl.program_id(1) == 0)
    def _():
        hh = _gelu(jnp.dot(x_ref[...].astype(jnp.bfloat16), w_ref[...],
                           preferred_element_type=jnp.float32) + b_ref[...])
        h_scr[...] = hh.astype(jnp.bfloat16)
    out_ref[...] = jnp.dot(h_scr[...], tokT_ref[...],
                           preferred_element_type=jnp.float32) + ob_ref[...]


# --------------------------------- wrapper -----------------------------------

def _vmem_budget(estimate_bytes):
    # Explicit scoped-VMEM budget (review: v7x only has 64 MiB of VMEM).
    return int(min(96 * 2 ** 20, max(32 * 2 ** 20, 2 * estimate_bytes)))


def bert_forward(ids, params, *, num_heads, head_size):
    B, L = ids.shape
    tok_w = params["tok_w"]                           # (V, H) f32, stays in HBM
    V, H = tok_w.shape
    D = num_heads * head_size
    F = 4 * H
    blocks = params["blocks"]
    n_blocks = len(blocks)
    bf16 = jnp.bfloat16

    # ---- host-side weight packing (glue; pre-packed once in production) ----
    wqkv = jnp.stack([jnp.concatenate([blk["wq"], blk["wk"], blk["wv"]], axis=1)
                      for blk in blocks]).astype(bf16)            # (n, H, 3D)
    wo = jnp.stack([blk["wo"] for blk in blocks]).astype(bf16)    # (n, D, H)
    w1 = jnp.stack([blk["w1"] for blk in blocks]).astype(bf16)    # (n, H, F)
    w2 = jnp.stack([blk["w2"] for blk in blocks]).astype(bf16)    # (n, F, H)

    # Pack the eight small per-layer params into ONE tensor -> one DMA/layer.
    PMAX = max(3 * D, F, H)

    def _row(a):
        a = a.reshape(1, -1)
        return jnp.pad(a, ((0, 0), (0, PMAX - a.shape[1])))

    small = jnp.stack([jnp.concatenate([
        _row(jnp.concatenate([blk["bq"], blk["bk"], blk["bv"]], axis=1)),
        _row(blk["bo"]),
        _row(blk["ln1_g"]), _row(blk["ln1_b"]),
        _row(blk["ln2_g"]), _row(blk["ln2_b"]),
        _row(blk["b1"]), _row(blk["b2"]),
    ], axis=0) for blk in blocks])                                # (n, 8, PMAX)

    # ---- token-embedding gather + positional add (wrapper, plain XLA) ------
    # Per review: no in-kernel per-token gather and no (V, H) table in VMEM.
    emb = jnp.take(tok_w, ids, axis=0) + params["pos_w"][None, :L, :]
    ids3 = ids[:, None, :].astype(jnp.int32)          # (B, 1, L) for the mask

    # ---- batch tiling: >=2 tiles on the 'parallel' axis (v7x megacore) -----
    bt = B // 2 if (B >= 2 and B % 2 == 0) else B
    # TODO(synk): at large B pick bt so bt*L lands in ~[128, 2048] rows/tile.
    n_bt = B // bt

    enc_est = (2 * 2 * (H * 3 * D + D * H + 2 * H * F)   # dbl-buffered weights
               + 2 * 8 * PMAX * 4                        # packed small params
               + 4 * bt * L * H * 4                      # emb in + resident out
               + 4 * bt * L * (3 * D + F))               # intermediates headroom

    # NOTE: after dropping tok_w from VMEM the remaining constant-index blocks
    # (emb LN gamma/beta, ids) are a few KiB, so pl.Buffered(1) would save
    # essentially nothing here; the explicit vmem_limit_bytes does the sizing.
    x = pl.pallas_call(
        functools.partial(_encoder_kernel, num_heads=num_heads,
                          head_size=head_size),
        out_shape=jax.ShapeDtypeStruct((B, L, H), jnp.float32),
        grid=(n_bt, n_blocks),
        in_specs=[
            pl.BlockSpec((bt, L, H), lambda bi, li: (bi, 0, 0)),   # embeddings
            pl.BlockSpec((bt, 1, L), lambda bi, li: (bi, 0, 0)),   # ids (mask)
            pl.BlockSpec((1, H), lambda bi, li: (0, 0)),           # emb LN g
            pl.BlockSpec((1, H), lambda bi, li: (0, 0)),           # emb LN b
            pl.BlockSpec((1, H, 3 * D), lambda bi, li: (li, 0, 0)),  # Wqkv
            pl.BlockSpec((1, D, H), lambda bi, li: (li, 0, 0)),      # Wo
            pl.BlockSpec((1, H, F), lambda bi, li: (li, 0, 0)),      # W1
            pl.BlockSpec((1, F, H), lambda bi, li: (li, 0, 0)),      # W2
            pl.BlockSpec((1, 8, PMAX), lambda bi, li: (li, 0, 0)),   # small
        ],
        out_specs=pl.BlockSpec((bt, L, H), lambda bi, li: (bi, 0, 0)),
        compiler_params=pltpu.CompilerParams(
            dimension_semantics=("parallel", "arbitrary"),
            vmem_limit_bytes=_vmem_budget(enc_est)),
    )(emb, ids3, params["emb_ln_g"], params["emb_ln_b"],
      wqkv, wo, w1, w2, small)

    # -------- output head: GELU(Linear(x)) @ tok_w^T + bias, row+vocab tiled -
    rows = B * L
    x2 = x.reshape(rows, H)
    TR = rows if rows <= 512 else 512       # row tile (>=256 at scale for MXU)
    TV = V if V <= 2048 else 2048           # vocab tile (multiple of 256 at scale)
    n_rt = pl.cdiv(rows, TR)
    n_vt = pl.cdiv(V, TV)
    tok_wT = tok_w.astype(bf16).T           # host pre-transpose -> (H, V)

    head_est = (2 * TR * H * 4 + TR * H * 2 + H * H * 2
                + 2 * (H * TV * 2 + TV * 4) + 4 * TR * TV)

    scores = pl.pallas_call(
        _head_kernel,
        out_shape=jax.ShapeDtypeStruct((rows, V), jnp.float32),
        grid=(n_rt, n_vt),
        in_specs=[
            pl.BlockSpec((TR, H), lambda ri, vi: (ri, 0)),         # x rows
            pl.BlockSpec((H, H), lambda ri, vi: (0, 0)),           # out linear W
            pl.BlockSpec((1, H), lambda ri, vi: (0, 0)),           # out linear b
            pl.BlockSpec((H, TV), lambda ri, vi: (0, vi)),         # tok_w^T cols
            pl.BlockSpec((1, TV), lambda ri, vi: (0, vi)),         # out bias
        ],
        out_specs=pl.BlockSpec((TR, TV), lambda ri, vi: (ri, vi)),
        scratch_shapes=[pltpu.VMEM((TR, H), jnp.bfloat16)],
        compiler_params=pltpu.CompilerParams(
            dimension_semantics=("parallel", "arbitrary"),
            vmem_limit_bytes=_vmem_budget(head_est)),
    )(x2, params["out_w"].astype(bf16), params["out_b"], tok_wT,
      params["out_bias"])

    return scores.reshape(B, L, V)


# --------------------------- deterministic params -----------------------------

def init_params(key, *, vocab, hidden, max_len, num_heads, head_size, n_blocks):
    std = 0.02
    D = num_heads * head_size
    F = 4 * hidden

    def nrm(k, shape):
        return std * jax.random.normal(k, shape, dtype=jnp.float32)

    keys = iter(jax.random.split(key, 8 + 12 * n_blocks))
    tok_w = jax.random.normal(next(keys), (vocab, hidden), dtype=jnp.float32)
    tok_w = tok_w.at[0].set(0.0)                                # padding_idx=0
    params = {
        "tok_w": tok_w,
        "pos_w": jax.random.normal(next(keys), (max_len, hidden),
                                   dtype=jnp.float32),
        "emb_ln_g": jnp.ones((1, hidden), jnp.float32),
        "emb_ln_b": jnp.zeros((1, hidden), jnp.float32),
        "out_w": nrm(next(keys), (hidden, hidden)),
        "out_b": nrm(next(keys), (1, hidden)),
        "out_bias": nrm(next(keys), (1, vocab)),
        "blocks": [],
    }
    for _ in range(n_blocks):
        blk = {
            "wq": nrm(next(keys), (hidden, D)), "bq": nrm(next(keys), (1, D)),
            "wk": nrm(next(keys), (hidden, D)), "bk": nrm(next(keys), (1, D)),
            "wv": nrm(next(keys), (hidden, D)), "bv": nrm(next(keys), (1, D)),
            "wo": nrm(next(keys), (D, hidden)), "bo": nrm(next(keys), (1, hidden)),
            "ln1_g": jnp.ones((1, hidden), jnp.float32),
            "ln1_b": jnp.zeros((1, hidden), jnp.float32),
            "ln2_g": jnp.ones((1, hidden), jnp.float32),
            "ln2_b": jnp.zeros((1, hidden), jnp.float32),
            "w1": nrm(next(keys), (hidden, F)), "b1": nrm(next(keys), (1, F)),
            "w2": nrm(next(keys), (F, hidden)), "b2": nrm(next(keys), (1, hidden)),
        }
        params["blocks"].append(blk)
    return params


# ------------------------------------ main ------------------------------------

if __name__ == "__main__":
    # Small config consistent with the module:
    #   num_items=30 -> vocab=32, hidden=32, max_len=seq=8, heads=2,
    #   head_size=16, num_blocks=2, batch=2.
    NUM_ITEMS, HIDDEN, MAX_LEN = 30, 32, 8
    HEADS, HEAD_SIZE, BLOCKS = 2, 16, 2
    VOCAB = NUM_ITEMS + 2
    B, L = 2, MAX_LEN

    root = jax.random.PRNGKey(0)
    k_ids, k_par = jax.random.split(root)

    params = init_params(k_par, vocab=VOCAB, hidden=HIDDEN, max_len=MAX_LEN,
                         num_heads=HEADS, head_size=HEAD_SIZE, n_blocks=BLOCKS)

    ids = jax.random.randint(k_ids, (B, L), 1, VOCAB, dtype=jnp.int32)
    ids = ids.at[0, L - 1].set(0)   # one padding token to exercise the mask

    fwd = jax.jit(functools.partial(bert_forward,
                                    num_heads=HEADS, head_size=HEAD_SIZE))
    scores = fwd(ids, params)
    jax.block_until_ready(scores)
    assert scores.shape == (B, L, VOCAB)
    assert bool(jnp.all(jnp.isfinite(scores)))
    print("KERNEL_OK")
</pallas_src>

<mosaic_0001>
module attributes {stable_mosaic.version = 11 : i64} {
  func.func @_encoder_kernel(%arg0: i32, %arg1: i32, %arg2: memref<1x8x32xf32, #tpu.memory_space<vmem>>, %arg3: memref<1x1x8xi32, #tpu.memory_space<vmem>>, %arg4: memref<1x32xf32, #tpu.memory_space<vmem>>, %arg5: memref<1x32xf32, #tpu.memory_space<vmem>>, %arg6: memref<1x32x96xbf16, #tpu.memory_space<vmem>>, %arg7: memref<1x32x32xbf16, #tpu.memory_space<vmem>>, %arg8: memref<1x32x128xbf16, #tpu.memory_space<vmem>>, %arg9: memref<1x128x32xbf16, #tpu.memory_space<vmem>>, %arg10: memref<1x8x128xf32, #tpu.memory_space<vmem>>, %arg11: memref<1x8x32xf32, #tpu.memory_space<vmem>>) attributes {dimension_semantics = [#tpu.dimension_semantics<parallel>, #tpu.dimension_semantics<arbitrary>], iteration_bounds = array<i64: 2, 2>, scalar_prefetch = 0 : i64, scratch_operands = 0 : i64, tpu.core_type = #tpu.core_type<tc>, window_params = [{transform_indices = @transform_0, window_bounds = array<i64: 1, 8, 32>}, {transform_indices = @transform_1, window_bounds = array<i64: 1, 1, 8>}, {pipeline_mode = #tpu.pipeline_mode<synchronous>, transform_indices = @transform_2, window_bounds = array<i64: 1, 32>}, {pipeline_mode = #tpu.pipeline_mode<synchronous>, transform_indices = @transform_3, window_bounds = array<i64: 1, 32>}, {transform_indices = @transform_4, window_bounds = array<i64: 1, 32, 96>}, {transform_indices = @transform_5, window_bounds = array<i64: 1, 32, 32>}, {transform_indices = @transform_6, window_bounds = array<i64: 1, 32, 128>}, {transform_indices = @transform_7, window_bounds = array<i64: 1, 128, 32>}, {transform_indices = @transform_8, window_bounds = array<i64: 1, 8, 128>}, {transform_indices = @transform_9, window_bounds = array<i64: 1, 8, 32>}]} {
    %c0_i32 = arith.constant 0 : i32
    %0 = arith.cmpi eq, %arg1, %c0_i32 : i32
    %1 = arith.extui %0 : i1 to i32
    %c0_i32_0 = arith.constant 0 : i32
    %2 = arith.cmpi ne, %1, %c0_i32_0 : i32
    scf.if %2 {
      %c0_54 = arith.constant 0 : index
      %c0_55 = arith.constant 0 : index
      %c0_56 = arith.constant 0 : index
      %158 = vector.load %arg2[%c0_54, %c0_55, %c0_56] : memref<1x8x32xf32, #tpu.memory_space<vmem>>, vector<1x8x32xf32>
      %159 = vector.shape_cast %158 : vector<1x8x32xf32> to vector<8x32xf32>
      %c0_57 = arith.constant 0 : index
      %c0_58 = arith.constant 0 : index
      %160 = vector.load %arg4[%c0_57, %c0_58] : memref<1x32xf32, #tpu.memory_space<vmem>>, vector<1x32xf32>
      %c0_59 = arith.constant 0 : index
      %c0_60 = arith.constant 0 : index
      %161 = vector.load %arg5[%c0_59, %c0_60] : memref<1x32xf32, #tpu.memory_space<vmem>>, vector<1x32xf32>
      %cst_61 = arith.constant dense<0.000000e+00> : vector<8xf32>
      %162 = vector.multi_reduction <add>, %159, %cst_61 [1] : vector<8x32xf32> to vector<8xf32>
      %163 = vector.shape_cast %162 : vector<8xf32> to vector<8x1xf32>
      %cst_62 = arith.constant 3.200000e+01 : f32
      %164 = vector.broadcast %cst_62 : f32 to vector<8x1xf32>
      %165 = arith.divf %163, %164 : vector<8x1xf32>
      %166 = vector.broadcast %165 : vector<8x1xf32> to vector<8x32xf32>
      %167 = arith.subf %159, %166 : vector<8x32xf32>
      %168 = arith.mulf %167, %167 : vector<8x32xf32>
      %cst_63 = arith.constant dense<0.000000e+00> : vector<8xf32>
      %169 = vector.multi_reduction <add>, %168, %cst_63 [1] : vector<8x32xf32> to vector<8xf32>
      %170 = vector.shape_cast %169 : vector<8xf32> to vector<8x1xf32>
      %cst_64 = arith.constant 3.100000e+01 : f32
      %171 = vector.broadcast %cst_64 : f32 to vector<8x1xf32>
      %172 = arith.divf %170, %171 : vector<8x1xf32>
      %173 = math.sqrt %172 : vector<8x1xf32>
      %cst_65 = arith.constant 9.99999997E-7 : f32
      %174 = vector.broadcast %cst_65 : f32 to vector<8x1xf32>
      %175 = arith.addf %173, %174 : vector<8x1xf32>
      %176 = tpu.reciprocal %175 {approx = true} : vector<8x1xf32> -> vector<8x1xf32>
      %177 = vector.broadcast %165 : vector<8x1xf32> to vector<8x32xf32>
      %178 = arith.subf %159, %177 : vector<8x32xf32>
      %179 = vector.broadcast %160 : vector<1x32xf32> to vector<8x32xf32>
      %180 = arith.mulf %179, %178 : vector<8x32xf32>
      %181 = vector.broadcast %176 : vector<8x1xf32> to vector<8x32xf32>
      %182 = arith.mulf %180, %181 : vector<8x32xf32>
      %183 = vector.broadcast %161 : vector<1x32xf32> to vector<8x32xf32>
      %184 = arith.addf %182, %183 : vector<8x32xf32>
      %185 = vector.shape_cast %184 : vector<8x32xf32> to vector<1x8x32xf32>
      %c0_66 = arith.constant 0 : index
      %c0_67 = arith.constant 0 : index
      %c0_68 = arith.constant 0 : index
      %186 = vector.load %arg11[%c0_66, %c0_67, %c0_68] : memref<1x8x32xf32, #tpu.memory_space<vmem>>, vector<1x8x32xf32>
      tpu.vector_store %arg11[%c0_66, %c0_67, %c0_68], %185 {strides = array<i32>} : memref<1x8x32xf32, #tpu.memory_space<vmem>>, vector<1x8x32xf32>,
    } else {
    }
    %c0 = arith.constant 0 : index
    %c0_1 = arith.constant 0 : index
    %c0_2 = arith.constant 0 : index
    %3 = vector.load %arg10[%c0, %c0_1, %c0_2] : memref<1x8x128xf32, #tpu.memory_space<vmem>>, vector<1x8x128xf32>
    %4 = vector.shape_cast %3 : vector<1x8x128xf32> to vector<8x128xf32>
    %5 = vector.extract_strided_slice %4 {offsets = [0, 0], sizes = [1, 96], strides = [1, 1]} : vector<8x128xf32> to vector<1x96xf32>
    %6 = vector.extract_strided_slice %4 {offsets = [1, 0], sizes = [1, 32], strides = [1, 1]} : vector<8x128xf32> to vector<1x32xf32>
    %7 = vector.extract_strided_slice %4 {offsets = [2, 0], sizes = [1, 32], strides = [1, 1]} : vector<8x128xf32> to vector<1x32xf32>
    %8 = vector.extract_strided_slice %4 {offsets = [3, 0], sizes = [1, 32], strides = [1, 1]} : vector<8x128xf32> to vector<1x32xf32>
    %9 = vector.extract_strided_slice %4 {offsets = [4, 0], sizes = [1, 32], strides = [1, 1]} : vector<8x128xf32> to vector<1x32xf32>
    %10 = vector.extract_strided_slice %4 {offsets = [5, 0], sizes = [1, 32], strides = [1, 1]} : vector<8x128xf32> to vector<1x32xf32>
    %11 = vector.extract_strided_slice %4 {offsets = [6, 0], sizes = [1, 128], strides = [1, 1]} : vector<8x128xf32> to vector<1x128xf32>
    %12 = vector.extract_strided_slice %4 {offsets = [7, 0], sizes = [1, 32], strides = [1, 1]} : vector<8x128xf32> to vector<1x32xf32>
    %c0_3 = arith.constant 0 : index
    %c0_4 = arith.constant 0 : index
    %c0_5 = arith.constant 0 : index
    %13 = vector.load %arg3[%c0_3, %c0_4, %c0_5] : memref<1x1x8xi32, #tpu.memory_space<vmem>>, vector<1x1x8xi32>
    %c0_i32_6 = arith.constant 0 : i32
    %14 = vector.broadcast %c0_i32_6 : i32 to vector<1x1x8xi32>
    %15 = arith.cmpi sgt, %13, %14 : vector<1x1x8xi32>
    %cst = arith.constant 0.000000e+00 : f32
    %cst_7 = arith.constant -1.000000e+09 : f32
    %16 = vector.broadcast %cst : f32 to vector<1x1x8xf32>
    %17 = vector.broadcast %cst_7 : f32 to vector<1x1x8xf32>
    %18 = arith.select %15, %16, %17 : vector<1x1x8xi1>, vector<1x1x8xf32>
    %19 = vector.shape_cast %18 : vector<1x1x8xf32> to vector<1x1x8xf32>
    %20 = vector.broadcast %19 : vector<1x1x8xf32> to vector<1x8x8xf32>
    %c0_8 = arith.constant 0 : index
    %c0_9 = arith.constant 0 : index
    %c0_10 = arith.constant 0 : index
    %21 = vector.load %arg11[%c0_8, %c0_9, %c0_10] : memref<1x8x32xf32, #tpu.memory_space<vmem>>, vector<1x8x32xf32>
    %22 = vector.shape_cast %21 : vector<1x8x32xf32> to vector<8x32xf32>
    %cst_11 = arith.constant dense<0.000000e+00> : vector<8xf32>
    %23 = vector.multi_reduction <add>, %22, %cst_11 [1] : vector<8x32xf32> to vector<8xf32>
    %24 = vector.shape_cast %23 : vector<8xf32> to vector<8x1xf32>
    %cst_12 = arith.constant 3.200000e+01 : f32
    %25 = vector.broadcast %cst_12 : f32 to vector<8x1xf32>
    %26 = arith.divf %24, %25 : vector<8x1xf32>
    %27 = vector.broadcast %26 : vector<8x1xf32> to vector<8x32xf32>
    %28 = arith.subf %22, %27 : vector<8x32xf32>
    %29 = arith.mulf %28, %28 : vector<8x32xf32>
    %cst_13 = arith.constant dense<0.000000e+00> : vector<8xf32>
    %30 = vector.multi_reduction <add>, %29, %cst_13 [1] : vector<8x32xf32> to vector<8xf32>
    %31 = vector.shape_cast %30 : vector<8xf32> to vector<8x1xf32>
    %cst_14 = arith.constant 3.100000e+01 : f32
    %32 = vector.broadcast %cst_14 : f32 to vector<8x1xf32>
    %33 = arith.divf %31, %32 : vector<8x1xf32>
    %34 = math.sqrt %33 : vector<8x1xf32>
    %cst_15 = arith.constant 9.99999997E-7 : f32
    %35 = vector.broadcast %cst_15 : f32 to vector<8x1xf32>
    %36 = arith.addf %34, %35 : vector<8x1xf32>
    %37 = tpu.reciprocal %36 {approx = true} : vector<8x1xf32> -> vector<8x1xf32>
    %38 = vector.broadcast %26 : vector<8x1xf32> to vector<8x32xf32>
    %39 = arith.subf %22, %38 : vector<8x32xf32>
    %40 = vector.broadcast %7 : vector<1x32xf32> to vector<8x32xf32>
    %41 = arith.mulf %40, %39 : vector<8x32xf32>
    %42 = vector.broadcast %37 : vector<8x1xf32> to vector<8x32xf32>
    %43 = arith.mulf %41, %42 : vector<8x32xf32>
    %44 = vector.broadcast %8 : vector<1x32xf32> to vector<8x32xf32>
    %45 = arith.addf %43, %44 : vector<8x32xf32>
    %46 = arith.truncf %45 : vector<8x32xf32> to vector<8x32xbf16>
    %c0_16 = arith.constant 0 : index
    %c0_17 = arith.constant 0 : index
    %c0_18 = arith.constant 0 : index
    %47 = vector.load %arg6[%c0_16, %c0_17, %c0_18] : memref<1x32x96xbf16, #tpu.memory_space<vmem>>, vector<1x32x96xbf16>
    %48 = vector.shape_cast %47 : vector<1x32x96xbf16> to vector<32x96xbf16>
    %cst_19 = arith.constant dense<0.000000e+00> : vector<8x96xf32>
    %49 = tpu.matmul %46, %48, %cst_19 {dimension_numbers = #tpu.dot_dimension_numbers<[1], [0], [0], [1], [0, 0, 1, 1], [], []>} : vector<8x32xbf16>, vector<32x96xbf16>, vector<8x96xf32> -> vector<8x96xf32>
    %50 = vector.broadcast %5 : vector<1x96xf32> to vector<8x96xf32>
    %51 = arith.addf %49, %50 : vector<8x96xf32>
    %52 = arith.truncf %51 : vector<8x96xf32> to vector<8x96xbf16>
    %53 = vector.extract_strided_slice %52 {offsets = [0, 0], sizes = [8, 16], strides = [1, 1]} : vector<8x96xbf16> to vector<8x16xbf16>
    %54 = vector.shape_cast %53 : vector<8x16xbf16> to vector<1x8x16xbf16>
    %55 = vector.extract_strided_slice %52 {offsets = [0, 32], sizes = [8, 16], strides = [1, 1]} : vector<8x96xbf16> to vector<8x16xbf16>
    %56 = vector.shape_cast %55 : vector<8x16xbf16> to vector<1x8x16xbf16>
    %57 = vector.extract_strided_slice %52 {offsets = [0, 64], sizes = [8, 16], strides = [1, 1]} : vector<8x96xbf16> to vector<8x16xbf16>
    %58 = vector.shape_cast %57 : vector<8x16xbf16> to vector<1x8x16xbf16>
    "tpu.trace_start"() <{level = 10 : i32, message = "bqd,bkd->bqk"}> : () -> ()
    %cst_20 = arith.constant dense<0.000000e+00> : vector<1x8x8xf32>
    %59 = tpu.matmul %54, %56, %cst_20 {dimension_numbers = #tpu.dot_dimension_numbers<[2], [2], [1], [1], [0, 0, 0, 1, 1, 1], [0], [0]>} : vector<1x8x16xbf16>, vector<1x8x16xbf16>, vector<1x8x8xf32> -> vector<1x8x8xf32>
    "tpu.trace_stop"() : () -> ()
    %cst_21 = arith.constant 2.500000e-01 : f32
    %60 = vector.broadcast %cst_21 : f32 to vector<1x8x8xf32>
    %61 = arith.mulf %59, %60 : vector<1x8x8xf32>
    %62 = arith.addf %61, %20 : vector<1x8x8xf32>
    %cst_22 = arith.constant dense<0xFF800000> : vector<1x8xf32>
    %63 = vector.multi_reduction <maximumf>, %62, %cst_22 [2] : vector<1x8x8xf32> to vector<1x8xf32>
    %64 = vector.shape_cast %63 : vector<1x8xf32> to vector<1x8x1xf32>
    %65 = vector.broadcast %64 : vector<1x8x1xf32> to vector<1x8x8xf32>
    %66 = arith.subf %62, %65 : vector<1x8x8xf32>
    %67 = math.exp %66 : vector<1x8x8xf32>
    %cst_23 = arith.constant dense<0.000000e+00> : vector<1x8xf32>
    %68 = vector.multi_reduction <add>, %67, %cst_23 [2] : vector<1x8x8xf32> to vector<1x8xf32>
    %69 = vector.shape_cast %68 : vector<1x8xf32> to vector<1x8x1xf32>
    %70 = tpu.reciprocal %69 {approx = true} : vector<1x8x1xf32> -> vector<1x8x1xf32>
    %71 = vector.broadcast %70 : vector<1x8x1xf32> to vector<1x8x8xf32>
    %72 = arith.mulf %67, %71 : vector<1x8x8xf32>
    %73 = arith.truncf %72 : vector<1x8x8xf32> to vector<1x8x8xbf16>
    "tpu.trace_start"() <{level = 10 : i32, message = "bqk,bkd->bqd"}> : () -> ()
    %cst_24 = arith.constant dense<0.000000e+00> : vector<1x8x16xf32>
    %74 = tpu.matmul %73, %58, %cst_24 {dimension_numbers = #tpu.dot_dimension_numbers<[2], [1], [1], [2], [0, 0, 0, 1, 1, 2], [0], [0]>} : vector<1x8x8xbf16>, vector<1x8x16xbf16>, vector<1x8x16xf32> -> vector<1x8x16xf32>
    "tpu.trace_stop"() : () -> ()
    %75 = arith.truncf %74 : vector<1x8x16xf32> to vector<1x8x16xbf16>
    %76 = vector.extract_strided_slice %52 {offsets = [0, 16], sizes = [8, 16], strides = [1, 1]} : vector<8x96xbf16> to vector<8x16xbf16>
    %77 = vector.shape_cast %76 : vector<8x16xbf16> to vector<1x8x16xbf16>
    %78 = vector.extract_strided_slice %52 {offsets = [0, 48], sizes = [8, 16], strides = [1, 1]} : vector<8x96xbf16> to vector<8x16xbf16>
    %79 = vector.shape_cast %78 : vector<8x16xbf16> to vector<1x8x16xbf16>
    %80 = vector.extract_strided_slice %52 {offsets = [0, 80], sizes = [8, 16], strides = [1, 1]} : vector<8x96xbf16> to vector<8x16xbf16>
    %81 = vector.shape_cast %80 : vector<8x16xbf16> to vector<1x8x16xbf16>
    "tpu.trace_start"() <{level = 10 : i32, message = "bqd,bkd->bqk"}> : () -> ()
    %cst_25 = arith.constant dense<0.000000e+00> : vector<1x8x8xf32>
    %82 = tpu.matmul %77, %79, %cst_25 {dimension_numbers = #tpu.dot_dimension_numbers<[2], [2], [1], [1], [0, 0, 0, 1, 1, 1], [0], [0]>} : vector<1x8x16xbf16>, vector<1x8x16xbf16>, vector<1x8x8xf32> -> vector<1x8x8xf32>
    "tpu.trace_stop"() : () -> ()
    %cst_26 = arith.constant 2.500000e-01 : f32
    %83 = vector.broadcast %cst_26 : f32 to vector<1x8x8xf32>
    %84 = arith.mulf %82, %83 : vector<1x8x8xf32>
    %85 = arith.addf %84, %20 : vector<1x8x8xf32>
    %cst_27 = arith.constant dense<0xFF800000> : vector<1x8xf32>
    %86 = vector.multi_reduction <maximumf>, %85, %cst_27 [2] : vector<1x8x8xf32> to vector<1x8xf32>
    %87 = vector.shape_cast %86 : vector<1x8xf32> to vector<1x8x1xf32>
    %88 = vector.broadcast %87 : vector<1x8x1xf32> to vector<1x8x8xf32>
    %89 = arith.subf %85, %88 : vector<1x8x8xf32>
    %90 = math.exp %89 : vector<1x8x8xf32>
    %cst_28 = arith.constant dense<0.000000e+00> : vector<1x8xf32>
    %91 = vector.multi_reduction <add>, %90, %cst_28 [2] : vector<1x8x8xf32> to vector<1x8xf32>
    %92 = vector.shape_cast %91 : vector<1x8xf32> to vector<1x8x1xf32>
    %93 = tpu.reciprocal %92 {approx = true} : vector<1x8x1xf32> -> vector<1x8x1xf32>
    %94 = vector.broadcast %93 : vector<1x8x1xf32> to vector<1x8x8xf32>
    %95 = arith.mulf %90, %94 : vector<1x8x8xf32>
    %96 = arith.truncf %95 : vector<1x8x8xf32> to vector<1x8x8xbf16>
    "tpu.trace_start"() <{level = 10 : i32, message = "bqk,bkd->bqd"}> : () -> ()
    %cst_29 = arith.constant dense<0.000000e+00> : vector<1x8x16xf32>
    %97 = tpu.matmul %96, %81, %cst_29 {dimension_numbers = #tpu.dot_dimension_numbers<[2], [1], [1], [2], [0, 0, 0, 1, 1, 2], [0], [0]>} : vector<1x8x8xbf16>, vector<1x8x16xbf16>, vector<1x8x16xf32> -> vector<1x8x16xf32>
    "tpu.trace_stop"() : () -> ()
    %98 = arith.truncf %97 : vector<1x8x16xf32> to vector<1x8x16xbf16>
    %99 = tpu.concatenate %75, %98 in 2 : vector<1x8x16xbf16>, vector<1x8x16xbf16> -> vector<1x8x32xbf16>
    %100 = vector.shape_cast %99 : vector<1x8x32xbf16> to vector<8x32xbf16>
    %c0_30 = arith.constant 0 : index
    %c0_31 = arith.constant 0 : index
    %c0_32 = arith.constant 0 : index
    %101 = vector.load %arg7[%c0_30, %c0_31, %c0_32] : memref<1x32x32xbf16, #tpu.memory_space<vmem>>, vector<1x32x32xbf16>
    %102 = vector.shape_cast %101 : vector<1x32x32xbf16> to vector<32x32xbf16>
    %cst_33 = arith.constant dense<0.000000e+00> : vector<8x32xf32>
    %103 = tpu.matmul %100, %102, %cst_33 {dimension_numbers = #tpu.dot_dimension_numbers<[1], [0], [0], [1], [0, 0, 1, 1], [], []>} : vector<8x32xbf16>, vector<32x32xbf16>, vector<8x32xf32> -> vector<8x32xf32>
    %104 = vector.broadcast %6 : vector<1x32xf32> to vector<8x32xf32>
    %105 = arith.addf %103, %104 : vector<8x32xf32>
    %106 = arith.addf %22, %105 : vector<8x32xf32>
    %cst_34 = arith.constant dense<0.000000e+00> : vector<8xf32>
    %107 = vector.multi_reduction <add>, %106, %cst_34 [1] : vector<8x32xf32> to vector<8xf32>
    %108 = vector.shape_cast %107 : vector<8xf32> to vector<8x1xf32>
    %cst_35 = arith.constant 3.200000e+01 : f32
    %109 = vector.broadcast %cst_35 : f32 to vector<8x1xf32>
    %110 = arith.divf %108, %109 : vector<8x1xf32>
    %111 = vector.broadcast %110 : vector<8x1xf32> to vector<8x32xf32>
    %112 = arith.subf %106, %111 : vector<8x32xf32>
    %113 = arith.mulf %112, %112 : vector<8x32xf32>
    %cst_36 = arith.constant dense<0.000000e+00> : vector<8xf32>
    %114 = vector.multi_reduction <add>, %113, %cst_36 [1] : vector<8x32xf32> to vector<8xf32>
    %115 = vector.shape_cast %114 : vector<8xf32> to vector<8x1xf32>
    %cst_37 = arith.constant 3.100000e+01 : f32
    %116 = vector.broadcast %cst_37 : f32 to vector<8x1xf32>
    %117 = arith.divf %115, %116 : vector<8x1xf32>
    %118 = math.sqrt %117 : vector<8x1xf32>
    %cst_38 = arith.constant 9.99999997E-7 : f32
    %119 = vector.broadcast %cst_38 : f32 to vector<8x1xf32>
    %120 = arith.addf %118, %119 : vector<8x1xf32>
    %121 = tpu.reciprocal %120 {approx = true} : vector<8x1xf32> -> vector<8x1xf32>
    %122 = vector.broadcast %110 : vector<8x1xf32> to vector<8x32xf32>
    %123 = arith.subf %106, %122 : vector<8x32xf32>
    %124 = vector.broadcast %9 : vector<1x32xf32> to vector<8x32xf32>
    %125 = arith.mulf %124, %123 : vector<8x32xf32>
    %126 = vector.broadcast %121 : vector<8x1xf32> to vector<8x32xf32>
    %127 = arith.mulf %125, %126 : vector<8x32xf32>
    %128 = vector.broadcast %10 : vector<1x32xf32> to vector<8x32xf32>
    %129 = arith.addf %127, %128 : vector<8x32xf32>
    %130 = arith.truncf %129 : vector<8x32xf32> to vector<8x32xbf16>
    %c0_39 = arith.constant 0 : index
    %c0_40 = arith.constant 0 : index
    %c0_41 = arith.constant 0 : index
    %131 = vector.load %arg8[%c0_39, %c0_40, %c0_41] : memref<1x32x128xbf16, #tpu.memory_space<vmem>>, vector<1x32x128xbf16>
    %132 = vector.shape_cast %131 : vector<1x32x128xbf16> to vector<32x128xbf16>
    %cst_42 = arith.constant dense<0.000000e+00> : vector<8x128xf32>
    %133 = tpu.matmul %130, %132, %cst_42 {dimension_numbers = #tpu.dot_dimension_numbers<[1], [0], [0], [1], [0, 0, 1, 1], [], []>} : vector<8x32xbf16>, vector<32x128xbf16>, vector<8x128xf32> -> vector<8x128xf32>
    %134 = vector.broadcast %11 : vector<1x128xf32> to vector<8x128xf32>
    %135 = arith.addf %133, %134 : vector<8x128xf32>
    %cst_43 = arith.constant 5.000000e-01 : f32
    %136 = vector.broadcast %cst_43 : f32 to vector<8x128xf32>
    %137 = arith.mulf %136, %135 : vector<8x128xf32>
    %cst_44 = arith.constant 4.471500e-02 : f32
    %138 = vector.broadcast %cst_44 : f32 to vector<8x128xf32>
    %139 = arith.mulf %138, %135 : vector<8x128xf32>
    %140 = arith.mulf %139, %135 : vector<8x128xf32>
    %141 = arith.mulf %140, %135 : vector<8x128xf32>
    %142 = arith.addf %135, %141 : vector<8x128xf32>
    %cst_45 = arith.constant 0.797884583 : f32
    %143 = vector.broadcast %cst_45 : f32 to vector<8x128xf32>
    %144 = arith.mulf %143, %142 : vector<8x128xf32>
    %145 = math.tanh %144 : vector<8x128xf32>
    %cst_46 = arith.constant 1.000000e+00 : f32
    %146 = vector.broadcast %cst_46 : f32 to vector<8x128xf32>
    %147 = arith.addf %146, %145 : vector<8x128xf32>
    %148 = arith.mulf %137, %147 : vector<8x128xf32>
    %149 = arith.truncf %148 : vector<8x128xf32> to vector<8x128xbf16>
    %c0_47 = arith.constant 0 : index
    %c0_48 = arith.constant 0 : index
    %c0_49 = arith.constant 0 : index
    %150 = vector.load %arg9[%c0_47, %c0_48, %c0_49] : memref<1x128x32xbf16, #tpu.memory_space<vmem>>, vector<1x128x32xbf16>
    %151 = vector.shape_cast %150 : vector<1x128x32xbf16> to vector<128x32xbf16>
    %cst_50 = arith.constant dense<0.000000e+00> : vector<8x32xf32>
    %152 = tpu.matmul %149, %151, %cst_50 {dimension_numbers = #tpu.dot_dimension_numbers<[1], [0], [0], [1], [0, 0, 1, 1], [], []>} : vector<8x128xbf16>, vector<128x32xbf16>, vector<8x32xf32> -> vector<8x32xf32>
    %153 = vector.broadcast %12 : vector<1x32xf32> to vector<8x32xf32>
    %154 = arith.addf %152, %153 : vector<8x32xf32>
    %155 = arith.addf %106, %154 : vector<8x32xf32>
    %156 = vector.shape_cast %155 : vector<8x32xf32> to vector<1x8x32xf32>
    %c0_51 = arith.constant 0 : index
    %c0_52 = arith.constant 0 : index
    %c0_53 = arith.constant 0 : index
    %157 = vector.load %arg11[%c0_51, %c0_52, %c0_53] : memref<1x8x32xf32, #tpu.memory_space<vmem>>, vector<1x8x32xf32>
    tpu.vector_store %arg11[%c0_51, %c0_52, %c0_53], %156 {strides = array<i32>} : memref<1x8x32xf32, #tpu.memory_space<vmem>>, vector<1x8x32xf32>,
    return
  }
  func.func @transform_0(%arg0: i32, %arg1: i32) -> (i32, i32, i32) {
    %c0_i32 = arith.constant 0 : i32
    %c0_i32_0 = arith.constant 0 : i32
    %c0_i32_1 = arith.constant 0 : i32
    return %arg0, %c0_i32, %c0_i32_0 : i32, i32, i32
  }
  func.func @transform_1(%arg0: i32, %arg1: i32) -> (i32, i32, i32) {
    %c0_i32 = arith.constant 0 : i32
    %c0_i32_0 = arith.constant 0 : i32
    %c0_i32_1 = arith.constant 0 : i32
    return %arg0, %c0_i32, %c0_i32_0 : i32, i32, i32
  }
  func.func @transform_2(%arg0: i32, %arg1: i32) -> (i32, i32) {
    %c0_i32 = arith.constant 0 : i32
    %c0_i32_0 = arith.constant 0 : i32
    %c0_i32_1 = arith.constant 0 : i32
    return %c0_i32, %c0_i32_0 : i32, i32
  }
  func.func @transform_3(%arg0: i32, %arg1: i32) -> (i32, i32) {
    %c0_i32 = arith.constant 0 : i32
    %c0_i32_0 = arith.constant 0 : i32
    %c0_i32_1 = arith.constant 0 : i32
    return %c0_i32, %c0_i32_0 : i32, i32
  }
  func.func @transform_4(%arg0: i32, %arg1: i32) -> (i32, i32, i32) {
    %c0_i32 = arith.constant 0 : i32
    %c0_i32_0 = arith.constant 0 : i32
    %c0_i32_1 = arith.constant 0 : i32
    return %arg1, %c0_i32, %c0_i32_0 : i32, i32, i32
  }
  func.func @transform_5(%arg0: i32, %arg1: i32) -> (i32, i32, i32) {
    %c0_i32 = arith.constant 0 : i32
    %c0_i32_0 = arith.constant 0 : i32
    %c0_i32_1 = arith.constant 0 : i32
    return %arg1, %c0_i32, %c0_i32_0 : i32, i32, i32
  }
  func.func @transform_6(%arg0: i32, %arg1: i32) -> (i32, i32, i32) {
    %c0_i32 = arith.constant 0 : i32
    %c0_i32_0 = arith.constant 0 : i32
    %c0_i32_1 = arith.constant 0 : i32
    return %arg1, %c0_i32, %c0_i32_0 : i32, i32, i32
  }
  func.func @transform_7(%arg0: i32, %arg1: i32) -> (i32, i32, i32) {
    %c0_i32 = arith.constant 0 : i32
    %c0_i32_0 = arith.constant 0 : i32
    %c0_i32_1 = arith.constant 0 : i32
    return %arg1, %c0_i32, %c0_i32_0 : i32, i32, i32
  }
  func.func @transform_8(%arg0: i32, %arg1: i32) -> (i32, i32, i32) {
    %c0_i32 = arith.constant 0 : i32
    %c0_i32_0 = arith.constant 0 : i32
    %c0_i32_1 = arith.constant 0 : i32
    return %arg1, %c0_i32, %c0_i32_0 : i32, i32, i32
  }
  func.func @transform_9(%arg0: i32, %arg1: i32) -> (i32, i32, i32) {
    %c0_i32 = arith.constant 0 : i32
    %c0_i32_0 = arith.constant 0 : i32
    %c0_i32_1 = arith.constant 0 : i32
    return %arg0, %c0_i32, %c0_i32_0 : i32, i32, i32
  }
}

module attributes {stable_mosaic.version = 11 : i64} {
  func.func @_head_kernel(%arg0: i32, %arg1: i32, %arg2: memref<16x32xf32, #tpu.memory_space<vmem>>, %arg3: memref<32x32xbf16, #tpu.memory_space<vmem>>, %arg4: memref<1x32xf32, #tpu.memory_space<vmem>>, %arg5: memref<32x32xbf16, #tpu.memory_space<vmem>>, %arg6: memref<1x32xf32, #tpu.memory_space<vmem>>, %arg7: memref<16x32xf32, #tpu.memory_space<vmem>>, %arg8: memref<16x32xbf16, #tpu.memory_space<vmem>>) attributes {dimension_semantics = [#tpu.dimension_semantics<parallel>, #tpu.dimension_semantics<arbitrary>], iteration_bounds = array<i64: 1, 1>, scalar_prefetch = 0 : i64, scratch_operands = 1 : i64, tpu.core_type = #tpu.core_type<tc>, window_params = [{transform_indices = @transform_0, window_bounds = array<i64: 16, 32>}, {pipeline_mode = #tpu.pipeline_mode<synchronous>, transform_indices = @transform_1, window_bounds = array<i64: 32, 32>}, {pipeline_mode = #tpu.pipeline_mode<synchronous>, transform_indices = @transform_2, window_bounds = array<i64: 1, 32>}, {transform_indices = @transform_3, window_bounds = array<i64: 32, 32>}, {transform_indices = @transform_4, window_bounds = array<i64: 1, 32>}, {transform_indices = @transform_5, window_bounds = array<i64: 16, 32>}]} {
    %c0_i32 = arith.constant 0 : i32
    %0 = arith.cmpi eq, %arg1, %c0_i32 : i32
    %1 = arith.extui %0 : i1 to i32
    %c0_i32_0 = arith.constant 0 : i32
    %2 = arith.cmpi ne, %1, %c0_i32_0 : i32
    scf.if %2 {
      %c0_8 = arith.constant 0 : index
      %c0_9 = arith.constant 0 : index
      %10 = vector.load %arg2[%c0_8, %c0_9] : memref<16x32xf32, #tpu.memory_space<vmem>>, vector<16x32xf32>
      %11 = arith.truncf %10 : vector<16x32xf32> to vector<16x32xbf16>
      %c0_10 = arith.constant 0 : index
      %c0_11 = arith.constant 0 : index
      %12 = vector.load %arg3[%c0_10, %c0_11] : memref<32x32xbf16, #tpu.memory_space<vmem>>, vector<32x32xbf16>
      %cst_12 = arith.constant dense<0.000000e+00> : vector<16x32xf32>
      %13 = tpu.matmul %11, %12, %cst_12 {dimension_numbers = #tpu.dot_dimension_numbers<[1], [0], [0], [1], [0, 0, 1, 1], [], []>} : vector<16x32xbf16>, vector<32x32xbf16>, vector<16x32xf32> -> vector<16x32xf32>
      %c0_13 = arith.constant 0 : index
      %c0_14 = arith.constant 0 : index
      %14 = vector.load %arg4[%c0_13, %c0_14] : memref<1x32xf32, #tpu.memory_space<vmem>>, vector<1x32xf32>
      %15 = vector.broadcast %14 : vector<1x32xf32> to vector<16x32xf32>
      %16 = arith.addf %13, %15 : vector<16x32xf32>
      %cst_15 = arith.constant 5.000000e-01 : f32
      %17 = vector.broadcast %cst_15 : f32 to vector<16x32xf32>
      %18 = arith.mulf %17, %16 : vector<16x32xf32>
      %cst_16 = arith.constant 4.471500e-02 : f32
      %19 = vector.broadcast %cst_16 : f32 to vector<16x32xf32>
      %20 = arith.mulf %19, %16 : vector<16x32xf32>
      %21 = arith.mulf %20, %16 : vector<16x32xf32>
      %22 = arith.mulf %21, %16 : vector<16x32xf32>
      %23 = arith.addf %16, %22 : vector<16x32xf32>
      %cst_17 = arith.constant 0.797884583 : f32
      %24 = vector.broadcast %cst_17 : f32 to vector<16x32xf32>
      %25 = arith.mulf %24, %23 : vector<16x32xf32>
      %26 = math.tanh %25 : vector<16x32xf32>
      %cst_18 = arith.constant 1.000000e+00 : f32
      %27 = vector.broadcast %cst_18 : f32 to vector<16x32xf32>
      %28 = arith.addf %27, %26 : vector<16x32xf32>
      %29 = arith.mulf %18, %28 : vector<16x32xf32>
      %30 = arith.truncf %29 : vector<16x32xf32> to vector<16x32xbf16>
      %c0_19 = arith.constant 0 : index
      %c0_20 = arith.constant 0 : index
      %31 = vector.load %arg8[%c0_19, %c0_20] : memref<16x32xbf16, #tpu.memory_space<vmem>>, vector<16x32xbf16>
      tpu.vector_store %arg8[%c0_19, %c0_20], %30 {strides = array<i32>} : memref<16x32xbf16, #tpu.memory_space<vmem>>, vector<16x32xbf16>,
    } else {
    }
    %c0 = arith.constant 0 : index
    %c0_1 = arith.constant 0 : index
    %3 = vector.load %arg8[%c0, %c0_1] : memref<16x32xbf16, #tpu.memory_space<vmem>>, vector<16x32xbf16>
    %c0_2 = arith.constant 0 : index
    %c0_3 = arith.constant 0 : index
    %4 = vector.load %arg5[%c0_2, %c0_3] : memref<32x32xbf16, #tpu.memory_space<vmem>>, vector<32x32xbf16>
    %cst = arith.constant dense<0.000000e+00> : vector<16x32xf32>
    %5 = tpu.matmul %3, %4, %cst {dimension_numbers = #tpu.dot_dimension_numbers<[1], [0], [0], [1], [0, 0, 1, 1], [], []>} : vector<16x32xbf16>, vector<32x32xbf16>, vector<16x32xf32> -> vector<16x32xf32>
    %c0_4 = arith.constant 0 : index
    %c0_5 = arith.constant 0 : index
    %6 = vector.load %arg6[%c0_4, %c0_5] : memref<1x32xf32, #tpu.memory_space<vmem>>, vector<1x32xf32>
    %7 = vector.broadcast %6 : vector<1x32xf32> to vector<16x32xf32>
    %8 = arith.addf %5, %7 : vector<16x32xf32>
    %c0_6 = arith.constant 0 : index
    %c0_7 = arith.constant 0 : index
    %9 = vector.load %arg7[%c0_6, %c0_7] : memref<16x32xf32, #tpu.memory_space<vmem>>, vector<16x32xf32>
    tpu.vector_store %arg7[%c0_6, %c0_7], %8 {strides = array<i32>} : memref<16x32xf32, #tpu.memory_space<vmem>>, vector<16x32xf32>,
    return
  }
  func.func @transform_0(%arg0: i32, %arg1: i32) -> (i32, i32) {
    %c0_i32 = arith.constant 0 : i32
    %c0_i32_0 = arith.constant 0 : i32
    return %arg0, %c0_i32 : i32, i32
  }
  func.func @transform_1(%arg0: i32, %arg1: i32) -> (i32, i32) {
    %c0_i32 = arith.constant 0 : i32
    %c0_i32_0 = arith.constant 0 : i32
    %c0_i32_1 = arith.constant 0 : i32
    return %c0_i32, %c0_i32_0 : i32, i32
  }
  func.func @transform_2(%arg0: i32, %arg1: i32) -> (i32, i32) {
    %c0_i32 = arith.constant 0 : i32
    %c0_i32_0 = arith.constant 0 : i32
    %c0_i32_1 = arith.constant 0 : i32
    return %c0_i32, %c0_i32_0 : i32, i32
  }
  func.func @transform_3(%arg0: i32, %arg1: i32) -> (i32, i32) {
    %c0_i32 = arith.constant 0 : i32
    %c0_i32_0 = arith.constant 0 : i32
    return %c0_i32, %arg1 : i32, i32
  }
  func.func @transform_4(%arg0: i32, %arg1: i32) -> (i32, i32) {
    %c0_i32 = arith.constant 0 : i32
    %c0_i32_0 = arith.constant 0 : i32
    return %c0_i32, %arg1 : i32, i32
  }
  func.func @transform_5(%arg0: i32, %arg1: i32) -> (i32, i32) {
    %c0_i32 = arith.constant 0 : i32
    return %arg0, %arg1 : i32, i32
  }
}

</mosaic_0001>

<llo_original>
// kernel: bert_forward.3
$region0: #{bert_forward.3}
  #allocation0 [shape = 'u32[]', space=smem, size = 0x4, offset = 0x4, fixed_abs, tag = 'smem constant byte address 0x4 - core index']
  #allocation1 [shape = 'u32[144,128]{1,0:T(1,128)}', space=vmem, size = 0x12000, scoped, tag = 'internal scratch']
  #allocation2 [shape = 'bf16[16,32]{1,0:T(8,128)(2,1)}', space=vmem, size = 0x1000, scoped, tag = 'scratch operand']
  %s0 = inlined_call_operand.vmem [shape: f32[16,32], index: 0, kind: input, shape index: {}]
  %s1 = inlined_call_operand.vmem [shape: bf16[32,32], index: 1, kind: input, shape index: {}]
  %s2 = inlined_call_operand.vmem [shape: f32[1,32], index: 2, kind: input, shape index: {}]
  %s3 = inlined_call_operand.vmem [shape: bf16[32,32], index: 3, kind: input, shape index: {}]
  %s4 = inlined_call_operand.vmem [shape: f32[1,32], index: 4, kind: input, shape index: {}]
  %s5 = inlined_call_operand.hbm [shape: f32[16,32], index: 5, kind: output, shape index: {}]
  %s6 = sld [smem:[#allocation0]]
  $region34: #{bert_forward.3} parent=0
    _
  %s8 = ssub.s32 1, %s6
  %s9 = scalar_select 0, %s8, %s6
  $region1: #{bert_forward.3} parent=0
    #allocation3 [shape = 'u8[8192]{0}', space=vmem, size = 0x2000, scoped, tag = 'output window, operand 0, single buffered']
    #allocation4 [shape = 's32[1]{0}', space=sflag, size = 0x4, scoped, tag = 'scoped memory for bert_forward.3']
    %10 = vsyncpa [#allocation4], 0
    // Predicated region
    $region2: #{bert_forward.3} parent=1 // pred_check
      _
    $region3: #{bert_forward.3} parent=1 // pred_check_branch
      %12 = sbr.rel (0) target = $region5
    $region4: #{bert_forward.3} parent=1 // pred_region
      _
    $region5: #{bert_forward.3} parent=1 // pred_fallthru
      _
    // Predicated region
    $region6: #{bert_forward.3} parent=1 // pred_check
      _
    $region7: #{bert_forward.3} parent=1 // pred_check_branch
      %14 = sbr.rel (0) target = $region9
    $region8: #{bert_forward.3} parent=1 // pred_region
      _
    $region9: #{bert_forward.3} parent=1 // pred_fallthru
      _
    // Predicated region
    $region10: #{bert_forward.3} parent=1 // pred_check
      _
    $region11: #{bert_forward.3} parent=1 // pred_check_branch
      %16 = sbr.rel (0) target = $region13
    $region12: #{bert_forward.3} parent=1 // pred_region
      _
    $region13: #{bert_forward.3} parent=1 // pred_fallthru
      _
    // Predicated region
    $region14: #{bert_forward.3} parent=1 // pred_check
      _
    $region15: #{bert_forward.3} parent=1 // pred_check_branch
      %18 = sbr.rel (0) target = $region17
    $region16: #{bert_forward.3} parent=1 // pred_region
      _
    $region17: #{bert_forward.3} parent=1 // pred_fallthru
      _
    // Predicated region
    $region18: #{bert_forward.3} parent=1 // pred_check
      _
    $region19: #{bert_forward.3} parent=1 // pred_check_branch
      %20 = sbr.rel (0) target = $region21
    $region20: #{bert_forward.3} parent=1 // pred_region
      _
    $region21: #{bert_forward.3} parent=1 // pred_fallthru
      _
    %p22 = scmp.eq.s32.totalorder 0, 0
    // Predicated region
    $region22: #{bert_forward.3} parent=1 // pred_check
      %p23 = pneg %p22
    $region23: #{bert_forward.3} parent=1 // pred_check_branch
      %25 = sbr.rel (%p23) target = $region25
    $region24: #{bert_forward.3} parent=1 // pred_region
      %v26 = vld [vmem:[%s0] sm:$0xff]
      %v27 = vld [vmem:[%s0 + $0x8] sm:$0xff]
      %v28 = vpack.c.bf16 %v27, %v26
      %v29 = vld [vmem:[%s1] sm:$0xf]
      %v30 = vld [vmem:[%s1 + $0x4] sm:$0xf]
      %v31 = vld [vmem:[%s1 + $0x8] sm:$0xf]
      %v32 = vld [vmem:[%s1 + $0xc] sm:$0xf]
      %v33 = vld [vmem:[%s2] sm:$0x1]
      %v35 = vlaneseq
      %v36 = vshrl.u32 %v35, 7
      %v37 = vsub.s32 0, %v36
      %v38 = vrot.slane %v33, %v37
      %v44 = vunpack.c.l.b16 %v29
      %v45 = vunpack.c.l.b16 %v30
      %v46 = vunpack.c.l.b16 %v31
      %v47 = vunpack.c.l.b16 %v32
      %v48 = vpack.c.b16 %v45, %v44
      %v49 = vpack.c.b16 %v47, %v46
      %vm52 = vcmask 261120
      %v54 = vsel %vm52, %v28, 0
      %56 = vmatprep.subr.bf16.mxu0 0
      %57 = vmatpush1.bf16.msra.mxu0 0
      %58 = vmatprep.subr.bf16.mxu0 0
      %59 = vmatpush1.bf16.msra.mxu0 0
      %60 = vmatprep.subr.bf16.mxu0 0
      %61 = vmatpush1.bf16.msra.mxu0 0
      %62 = vmatprep.subr.bf16.mxu0 0
      %63 = vmatpush1.bf16.msra.mxu0 0
      %64 = vmatprep.subr.bf16.mxu0 0
      %65 = vmatpush1.bf16.msra.mxu0 0
      %66 = vmatprep.subr.bf16.mxu0 0
      %67 = vmatpush1.bf16.msra.mxu0 0
      %68 = vmatprep.subr.bf16.mxu0 0
      %69 = vmatpush1.bf16.msra.mxu0 %v49
      %70 = vmatprep.subr.bf16.mxu0 0
      %71 = vmatpush1.bf16.msra.mxu0 %v48
      %72 = vmatprep.subr.bf16.mxu0 0
      %73 = vmatpush2.bf16.msra.mxu0 0
      %74 = vmatprep.subr.bf16.mxu0 0
      %75 = vmatpush2.bf16.msra.mxu0 0
      %76 = vmatprep.subr.bf16.mxu0 0
      %77 = vmatpush2.bf16.msra.mxu0 0
      %78 = vmatprep.subr.bf16.mxu0 0
      %79 = vmatpush2.bf16.msra.mxu0 0
      %80 = vmatprep.subr.bf16.mxu0 0
      %81 = vmatpush2.bf16.msra.mxu0 0
      %82 = vmatprep.subr.bf16.mxu0 0
      %83 = vmatpush2.bf16.msra.mxu0 0
      %84 = vmatprep.subr.bf16.mxu0 0
      %85 = vmatpush2.bf16.msra.mxu0 0
      %86 = vmatprep.subr.bf16.mxu0 0
      %87 = vmatpush2.bf16.msra.mxu0 0
      %88 = vmatprep.mubr.bf16.mxu0 0
      %89 = vmatmul.mubr.bf16.gmra.mxu0 %v54
      %v90 = vpop.f32.mrf.mxu0
      %v91 = vadd.f32 %v38, %v90
      %v92 = vpop.f32.mrf.mxu0
      %v93 = vpop.f32.mrf.mxu0
      %v94 = vadd.f32 %v38, %v93
      %v95 = vpop.f32.mrf.mxu0
      %96 = vdwg.mxu0
      %v97 = vmul.f32 %v91, 0.5
      %v98 = vmul.f32 %v94, 0.5
      %v99 = vmul.f32 %v91, 0.044715
      %v100 = vmul.f32 %v94, 0.044715
      %v101 = vmul.f32 %v99, %v91
      %v102 = vmul.f32 %v100, %v94
      %v103 = vmul.f32 %v101, %v91
      %v104 = vmul.f32 %v102, %v94
      %v105 = vadd.f32 %v91, %v103
      %v106 = vadd.f32 %v94, %v104
      %v107 = vmul.f32 %v105, 0.7978846
      %v108 = vmul.f32 %v106, 0.7978846
      %v109 = vtanh.pop %v107
      %v110 = vtanh.pop %v108
      %v111 = vadd.f32 %v109, 1.0
      %v112 = vadd.f32 %v110, 1.0
      %v113 = vmul.f32 %v97, %v111
      %v114 = vmul.f32 %v98, %v112
      %v115 = vpack.c.bf16 %v114, %v113
      %v117 = vunpack.c.l.b16 %v115
      %v118 = vunpack.c.h.b16 %v115
      %v119 = vpack.c.b16 %v117, %v117
      %v120 = vpack.c.b16 %v118, %v118
      %vm123 = vcmask 257024
      %124 = vst.msk [vmem:[#allocation2] sm:$0xf] %vm123, %v119
      %125 = vst.msk [vmem:[#allocation2 + $0x4] sm:$0xf] %vm123, %v120
    $region25: #{bert_forward.3} parent=1 // pred_fallthru
      _
    %v126 = vld [vmem:[#allocation2] sm:$0xf]
    %v127 = vld [vmem:[#allocation2 + $0x4] sm:$0xf]
    %v128 = vld [vmem:[%s3] sm:$0xf]
    %v129 = vld [vmem:[%s3 + $0x4] sm:$0xf]
    %v130 = vld [vmem:[%s3 + $0x8] sm:$0xf]
    %v131 = vld [vmem:[%s3 + $0xc] sm:$0xf]
    %v132 = vld [vmem:[%s4] sm:$0x1]
    %v134 = vlaneseq
    %v135 = vshrl.u32 %v134, 7
    %v136 = vsub.s32 0, %v135
    %v137 = vrot.slane %v132, %v136
    %v141 = vunpack.c.l.b16 %v126
    %v142 = vunpack.c.l.b16 %v127
    %v143 = vpack.c.b16 %v142, %v141
    %v148 = vunpack.c.l.b16 %v128
    %v149 = vunpack.c.l.b16 %v129
    %v150 = vunpack.c.l.b16 %v130
    %v151 = vunpack.c.l.b16 %v131
    %v152 = vpack.c.b16 %v149, %v148
    %v153 = vpack.c.b16 %v151, %v150
    %vm156 = vcmask 261120
    %v158 = vsel %vm156, %v143, 0
    %160 = vmatprep.subr.bf16.mxu0 0
    %161 = vmatpush1.bf16.msra.mxu0 0
    %162 = vmatprep.subr.bf16.mxu0 0
    %163 = vmatpush1.bf16.msra.mxu0 0
    %164 = vmatprep.subr.bf16.mxu0 0
    %165 = vmatpush1.bf16.msra.mxu0 0
    %166 = vmatprep.subr.bf16.mxu0 0
    %167 = vmatpush1.bf16.msra.mxu0 0
    %168 = vmatprep.subr.bf16.mxu0 0
    %169 = vmatpush1.bf16.msra.mxu0 0
    %170 = vmatprep.subr.bf16.mxu0 0
    %171 = vmatpush1.bf16.msra.mxu0 0
    %172 = vmatprep.subr.bf16.mxu0 0
    %173 = vmatpush1.bf16.msra.mxu0 %v153
    %174 = vmatprep.subr.bf16.mxu0 0
    %175 = vmatpush1.bf16.msra.mxu0 %v152
    %176 = vmatprep.subr.bf16.mxu0 0
    %177 = vmatpush2.bf16.msra.mxu0 0
    %178 = vmatprep.subr.bf16.mxu0 0
    %179 = vmatpush2.bf16.msra.mxu0 0
    %180 = vmatprep.subr.bf16.mxu0 0
    %181 = vmatpush2.bf16.msra.mxu0 0
    %182 = vmatprep.subr.bf16.mxu0 0
    %183 = vmatpush2.bf16.msra.mxu0 0
    %184 = vmatprep.subr.bf16.mxu0 0
    %185 = vmatpush2.bf16.msra.mxu0 0
    %186 = vmatprep.subr.bf16.mxu0 0
    %187 = vmatpush2.bf16.msra.mxu0 0
    %188 = vmatprep.subr.bf16.mxu0 0
    %189 = vmatpush2.bf16.msra.mxu0 0
    %190 = vmatprep.subr.bf16.mxu0 0
    %191 = vmatpush2.bf16.msra.mxu0 0
    %192 = vmatprep.mubr.bf16.mxu0 0
    %193 = vmatmul.mubr.bf16.gmra.mxu0 %v158
    %v194 = vpop.f32.mrf.mxu0
    %v195 = vadd.f32 %v137, %v194
    %v196 = vpop.f32.mrf.mxu0
    %v197 = vpop.f32.mrf.mxu0
    %v198 = vadd.f32 %v137, %v197
    %v199 = vpop.f32.mrf.mxu0
    %200 = vdwg.mxu0
    %201 = vst.msk [vmem:[#allocation3] sm:$0xff] %vm156, %v195
    %202 = vst.msk [vmem:[#allocation3 + $0x8] sm:$0xff] %vm156, %v198
    // Predicated region
    $region26: #{bert_forward.3} parent=1 // pred_check
      _
    $region27: #{bert_forward.3} parent=1 // pred_check_branch
      %204 = sbr.rel (0) target = $region29
    $region28: #{bert_forward.3} parent=1 // pred_region
      %s206 = ssub.s32 256, 256
      %207 = vsyncadd [#allocation4], %s206
      %s208 = sshll.u32 [#allocation3], 4
      %s209 = int_to_ptr.vmem [resolvable:$true] %s208
      %214 = dma.vmem_to_hbm [thread:$0]  %s209, 256, %s5, [#allocation4], 128, 128, 8
    $region29: #{bert_forward.3} parent=1 // pred_fallthru
      _
    // Predicated region
    $region30: #{bert_forward.3} parent=1 // pred_check
      _
    $region31: #{bert_forward.3} parent=1 // pred_check_branch
      %216 = sbr.rel (0) target = $region33
    $region32: #{bert_forward.3} parent=1 // pred_region
      %217 = dma.done [#allocation4], 256
    $region33: #{bert_forward.3} parent=1 // pred_fallthru
      _
    %218 = vsyncpa [#allocation4], 1

// kernel: bert_forward.2
$region0: #{bert_forward.2}
  #allocation0 [shape = 'u32[]', space=smem, size = 0x4, offset = 0x4, fixed_abs, tag = 'smem constant byte address 0x4 - core index']
  #allocation1 [shape = 'u32[144,128]{1,0:T(1,128)}', space=vmem, size = 0x12000, scoped, tag = 'internal scratch']
  %s0 = inlined_call_operand.vmem [shape: f32[2,8,32], index: 0, kind: input, shape index: {}]
  %s1 = inlined_call_operand.vmem [shape: s32[2,1,8], index: 1, kind: input, shape index: {}]
  %s2 = inlined_call_operand.vmem [shape: f32[1,32], index: 2, kind: input, shape index: {}]
  %s3 = inlined_call_operand.vmem [shape: f32[1,32], index: 3, kind: input, shape index: {}]
  %s4 = inlined_call_operand.vmem [shape: bf16[2,32,96], index: 4, kind: input, shape index: {}]
  %s5 = inlined_call_operand.vmem [shape: bf16[2,32,32], index: 5, kind: input, shape index: {}]
  %s6 = inlined_call_operand.vmem [shape: bf16[2,32,128], index: 6, kind: input, shape index: {}]
  %s7 = inlined_call_operand.vmem [shape: bf16[2,128,32], index: 7, kind: input, shape index: {}]
  %s8 = inlined_call_operand.vmem [shape: f32[2,8,128], index: 8, kind: input, shape index: {}]
  %s9 = inlined_call_operand.vmem [shape: f32[2,8,32], index: 9, kind: output, shape index: {}]
  %s10 = sld [smem:[#allocation0]]
  $region73: #{bert_forward.2} parent=0
    _
  %s12 = ssub.s32 1, %s10
  %s13 = scalar_select 0, %s12, %s10
  loop: start=0, step=1, limit=6
  $region2: #{bert_forward.2} parent=0 // loop_pre_header
    _
  $region3: #{bert_forward.2} parent=0 // loop_header
    %s15 = sphi 0, %s19
    %p16 = scmp.ge.s32.totalorder %s15, 6
    %s22 = sphi 0, %s34
    %s23 = sphi 0, %s30
    %s24 = sphi 0, %s22
    %s25 = sphi 0, %s23
    %s26 = sphi 0, %s24
    %s27 = sphi 0, %s25
    %s37 = sphi 0, %s39
    %s40 = sphi 0, %s37
    %s41 = sphi 0, %s40
    %s57 = sphi 0, %s41
    %s63 = sphi 0, %s65
    %s66 = sphi 0, %s63
    %s67 = sphi 0, %s66
    %s83 = sphi 0, %s67
    %s87 = sphi 0, %s87
    %s89 = sphi 0, %s87
    %s90 = sphi 0, %s89
    %s104 = sphi 0, %s90
    %s108 = sphi 0, %s108
    %s110 = sphi 0, %s108
    %s111 = sphi 0, %s110
    %s125 = sphi 0, %s111
    %s131 = sphi 0, %s133
    %s134 = sphi 0, %s131
    %s135 = sphi 0, %s134
    %s151 = sphi 0, %s135
    %s157 = sphi 0, %s159
    %s160 = sphi 0, %s157
    %s161 = sphi 0, %s160
    %s177 = sphi 0, %s161
    %s183 = sphi 0, %s185
    %s186 = sphi 0, %s183
    %s187 = sphi 0, %s186
    %s203 = sphi 0, %s187
    %s209 = sphi 0, %s211
    %s212 = sphi 0, %s209
    %s213 = sphi 0, %s212
    %s229 = sphi 0, %s213
    %s235 = sphi 0, %s237
    %s238 = sphi 0, %s235
    %s239 = sphi 0, %s238
    %s255 = sphi 0, %s239
    %s261 = sphi 0, %s263
    %s264 = sphi 0, %s261
    %s265 = sphi 0, %s264
    %s281 = sphi 0, %s265
  $region4: #{bert_forward.2} parent=0 // loop_header_branch
    %18 = sbr.rel (%p16) target = $region8
  $region5: #{bert_forward.2} parent=0 // loop_body
    %s20 = ssub.s32 %s15, 1
    %s21 = ssub.s32 %s15, 2
    %s28 = sadd.s32 1, %s23
    %p29 = scmp.ge.s32.totalorder %s28, 2
    %s30 = scalar_select %p29, 0, %s28
    %s31 = sadd.s32 1, %s22
    %s32 = scalar_select %p29, %s31, %s22
    %p33 = scmp.ge.s32.totalorder %s32, 2
    %s34 = scalar_select %p33, 0, %s32
    %s35 = ssub.s32 %s22, %s34
    %p36 = scmp.eq.s32.totalorder %s35, 0
    %s38 = sadd.s32 %s37, 1
    %s39 = scalar_select %p36, %s37, %s38
    %p42 = pneg %p36
    %p43 = scmp.eq.s32.totalorder %s15, 3
    %p44 = por %p42, %p43
    %p45 = scmp.ne.s32.totalorder %s37, %s40
    %p46 = scmp.eq.s32.totalorder %s15, 0
    %p47 = por %p45, %p46
    %p48 = scmp.ne.s32.totalorder %s37, %s40
    %p49 = scmp.eq.s32.totalorder %s20, 3
    %p50 = por %p48, %p49
    %p51 = scmp.ne.s32.totalorder %s40, %s41
    %p52 = scmp.eq.s32.totalorder %s20, 0
    %p53 = por %p51, %p52
    %p54 = scmp.ne.s32.totalorder %s40, %s41
    %p55 = scmp.eq.s32.totalorder %s21, 3
    %p56 = por %p54, %p55
    %p58 = scmp.ne.s32.totalorder %s41, %s57
    %p59 = scmp.eq.s32.totalorder %s21, 0
    %p60 = por %p58, %p59
    %s61 = ssub.s32 %s22, %s34
    %p62 = scmp.eq.s32.totalorder %s61, 0
    %s64 = sadd.s32 %s63, 1
    %s65 = scalar_select %p62, %s63, %s64
    %p68 = pneg %p62
    %p69 = scmp.eq.s32.totalorder %s15, 3
    %p70 = por %p68, %p69
    %p71 = scmp.ne.s32.totalorder %s63, %s66
    %p72 = scmp.eq.s32.totalorder %s15, 0
    %p73 = por %p71, %p72
    %p74 = scmp.ne.s32.totalorder %s63, %s66
    %p75 = scmp.eq.s32.totalorder %s20, 3
    %p76 = por %p74, %p75
    %p77 = scmp.ne.s32.totalorder %s66, %s67
    %p78 = scmp.eq.s32.totalorder %s20, 0
    %p79 = por %p77, %p78
    %p80 = scmp.ne.s32.totalorder %s66, %s67
    %p81 = scmp.eq.s32.totalorder %s21, 3
    %p82 = por %p80, %p81
    %p84 = scmp.ne.s32.totalorder %s67, %s83
    %p85 = scmp.eq.s32.totalorder %s21, 0
    %p86 = por %p84, %p85
    %s88 = sadd.s32 %s87, 1
    %p91 = scmp.eq.s32.totalorder %s15, 3
    %p92 = scmp.ne.s32.totalorder %s87, %s89
    %p93 = scmp.eq.s32.totalorder %s15, 0
    %p94 = por %p92, %p93
    %p95 = scmp.ne.s32.totalorder %s87, %s89
    %p96 = scmp.eq.s32.totalorder %s20, 3
    %p97 = por %p95, %p96
    %p98 = scmp.ne.s32.totalorder %s89, %s90
    %p99 = scmp.eq.s32.totalorder %s20, 0
    %p100 = por %p98, %p99
    %p101 = scmp.ne.s32.totalorder %s89, %s90
    %p102 = scmp.eq.s32.totalorder %s21, 3
    %p103 = por %p101, %p102
    %p105 = scmp.ne.s32.totalorder %s90, %s104
    %p106 = scmp.eq.s32.totalorder %s21, 0
    %p107 = por %p105, %p106
    %s109 = sadd.s32 %s108, 1
    %p112 = scmp.eq.s32.totalorder %s15, 3
    %p113 = scmp.ne.s32.totalorder %s108, %s110
    %p114 = scmp.eq.s32.totalorder %s15, 0
    %p115 = por %p113, %p114
    %p116 = scmp.ne.s32.totalorder %s108, %s110
    %p117 = scmp.eq.s32.totalorder %s20, 3
    %p118 = por %p116, %p117
    %p119 = scmp.ne.s32.totalorder %s110, %s111
    %p120 = scmp.eq.s32.totalorder %s20, 0
    %p121 = por %p119, %p120
    %p122 = scmp.ne.s32.totalorder %s110, %s111
    %p123 = scmp.eq.s32.totalorder %s21, 3
    %p124 = por %p122, %p123
    %p126 = scmp.ne.s32.totalorder %s111, %s125
    %p127 = scmp.eq.s32.totalorder %s21, 0
    %p128 = por %p126, %p127
    %s129 = ssub.s32 %s23, %s30
    %p130 = scmp.eq.s32.totalorder %s129, 0
    %s132 = sadd.s32 %s131, 1
    %s133 = scalar_select %p130, %s131, %s132
    %p136 = pneg %p130
    %p137 = scmp.eq.s32.totalorder %s15, 3
    %p138 = por %p136, %p137
    %p139 = scmp.ne.s32.totalorder %s131, %s134
    %p140 = scmp.eq.s32.totalorder %s15, 0
    %p141 = por %p139, %p140
    %p142 = scmp.ne.s32.totalorder %s131, %s134
    %p143 = scmp.eq.s32.totalorder %s20, 3
    %p144 = por %p142, %p143
    %p145 = scmp.ne.s32.totalorder %s134, %s135
    %p146 = scmp.eq.s32.totalorder %s20, 0
    %p147 = por %p145, %p146
    %p148 = scmp.ne.s32.totalorder %s134, %s135
    %p149 = scmp.eq.s32.totalorder %s21, 3
    %p150 = por %p148, %p149
    %p152 = scmp.ne.s32.totalorder %s135, %s151
    %p153 = scmp.eq.s32.totalorder %s21, 0
    %p154 = por %p152, %p153
    %s155 = ssub.s32 %s23, %s30
    %p156 = scmp.eq.s32.totalorder %s155, 0
    %s158 = sadd.s32 %s157, 1
    %s159 = scalar_select %p156, %s157, %s158
    %p162 = pneg %p156
    %p163 = scmp.eq.s32.totalorder %s15, 3
    %p164 = por %p162, %p163
    %p165 = scmp.ne.s32.totalorder %s157, %s160
    %p166 = scmp.eq.s32.totalorder %s15, 0
    %p167 = por %p165, %p166
    %p168 = scmp.ne.s32.totalorder %s157, %s160
    %p169 = scmp.eq.s32.totalorder %s20, 3
    %p170 = por %p168, %p169
    %p171 = scmp.ne.s32.totalorder %s160, %s161
    %p172 = scmp.eq.s32.totalorder %s20, 0
    %p173 = por %p171, %p172
    %p174 = scmp.ne.s32.totalorder %s160, %s161
    %p175 = scmp.eq.s32.totalorder %s21, 3
    %p176 = por %p174, %p175
    %p178 = scmp.ne.s32.totalorder %s161, %s177
    %p179 = scmp.eq.s32.totalorder %s21, 0
    %p180 = por %p178, %p179
    %s181 = ssub.s32 %s23, %s30
    %p182 = scmp.eq.s32.totalorder %s181, 0
    %s184 = sadd.s32 %s183, 1
    %s185 = scalar_select %p182, %s183, %s184
    %p188 = pneg %p182
    %p189 = scmp.eq.s32.totalorder %s15, 3
    %p190 = por %p188, %p189
    %p191 = scmp.ne.s32.totalorder %s183, %s186
    %p192 = scmp.eq.s32.totalorder %s15, 0
    %p193 = por %p191, %p192
    %p194 = scmp.ne.s32.totalorder %s183, %s186
    %p195 = scmp.eq.s32.totalorder %s20, 3
    %p196 = por %p194, %p195
    %p197 = scmp.ne.s32.totalorder %s186, %s187
    %p198 = scmp.eq.s32.totalorder %s20, 0
    %p199 = por %p197, %p198
    %p200 = scmp.ne.s32.totalorder %s186, %s187
    %p201 = scmp.eq.s32.totalorder %s21, 3
    %p202 = por %p200, %p201
    %p204 = scmp.ne.s32.totalorder %s187, %s203
    %p205 = scmp.eq.s32.totalorder %s21, 0
    %p206 = por %p204, %p205
    %s207 = ssub.s32 %s23, %s30
    %p208 = scmp.eq.s32.totalorder %s207, 0
    %s210 = sadd.s32 %s209, 1
    %s211 = scalar_select %p208, %s209, %s210
    %p214 = pneg %p208
    %p215 = scmp.eq.s32.totalorder %s15, 3
    %p216 = por %p214, %p215
    %p217 = scmp.ne.s32.totalorder %s209, %s212
    %p218 = scmp.eq.s32.totalorder %s15, 0
    %p219 = por %p217, %p218
    %p220 = scmp.ne.s32.totalorder %s209, %s212
    %p221 = scmp.eq.s32.totalorder %s20, 3
    %p222 = por %p220, %p221
    %p223 = scmp.ne.s32.totalorder %s212, %s213
    %p224 = scmp.eq.s32.totalorder %s20, 0
    %p225 = por %p223, %p224
    %p226 = scmp.ne.s32.totalorder %s212, %s213
    %p227 = scmp.eq.s32.totalorder %s21, 3
    %p228 = por %p226, %p227
    %p230 = scmp.ne.s32.totalorder %s213, %s229
    %p231 = scmp.eq.s32.totalorder %s21, 0
    %p232 = por %p230, %p231
    %s233 = ssub.s32 %s23, %s30
    %p234 = scmp.eq.s32.totalorder %s233, 0
    %s236 = sadd.s32 %s235, 1
    %s237 = scalar_select %p234, %s235, %s236
    %p240 = pneg %p234
    %p241 = scmp.eq.s32.totalorder %s15, 3
    %p242 = por %p240, %p241
    %p243 = scmp.ne.s32.totalorder %s235, %s238
    %p244 = scmp.eq.s32.totalorder %s15, 0
    %p245 = por %p243, %p244
    %p246 = scmp.ne.s32.totalorder %s235, %s238
    %p247 = scmp.eq.s32.totalorder %s20, 3
    %p248 = por %p246, %p247
    %p249 = scmp.ne.s32.totalorder %s238, %s239
    %p250 = scmp.eq.s32.totalorder %s20, 0
    %p251 = por %p249, %p250
    %p252 = scmp.ne.s32.totalorder %s238, %s239
    %p253 = scmp.eq.s32.totalorder %s21, 3
    %p254 = por %p252, %p253
    %p256 = scmp.ne.s32.totalorder %s239, %s255
    %p257 = scmp.eq.s32.totalorder %s21, 0
    %p258 = por %p256, %p257
    %s259 = ssub.s32 %s22, %s34
    %p260 = scmp.eq.s32.totalorder %s259, 0
    %s262 = sadd.s32 %s261, 1
    %s263 = scalar_select %p260, %s261, %s262
    %p266 = pneg %p260
    %p267 = scmp.eq.s32.totalorder %s15, 3
    %p268 = por %p266, %p267
    %p269 = scmp.ne.s32.totalorder %s261, %s264
    %p270 = scmp.eq.s32.totalorder %s15, 0
    %p271 = por %p269, %p270
    %p272 = scmp.ne.s32.totalorder %s261, %s264
    %p273 = scmp.eq.s32.totalorder %s20, 3
    %p274 = por %p272, %p273
    %p275 = scmp.ne.s32.totalorder %s264, %s265
    %p276 = scmp.eq.s32.totalorder %s20, 0
    %p277 = por %p275, %p276
    %p278 = scmp.ne.s32.totalorder %s264, %s265
    %p279 = scmp.eq.s32.totalorder %s21, 3
    %p280 = por %p278, %p279
    %p282 = scmp.ne.s32.totalorder %s265, %s281
    %p283 = scmp.eq.s32.totalorder %s21, 0
    %p284 = por %p282, %p283
    %p285 = scmp.le.s32.totalorder 1, %s15
    %p286 = scmp.lt.s32.totalorder %s15, 5
    %p287 = pnand %p285, %p286
    %p288 = pneg %p287
    // Predicated region
    $region9: #{bert_forward.2} parent=5 // pred_check
      _
    $region10: #{bert_forward.2} parent=5 // pred_check_branch
      %290 = sbr.rel (%p287) target = $region12
    $region11: #{bert_forward.2} parent=5 // pred_region
      %s291 = ssub.s32 %s15, 1
      // Predicated region
      $region13: #{bert_forward.2} parent=11 // pred_check
        %p292 = pneg %p100
      $region14: #{bert_forward.2} parent=11 // pred_check_branch
        %294 = sbr.rel (%p292) target = $region16
      $region15: #{bert_forward.2} parent=11 // pred_region
        _
      $region16: #{bert_forward.2} parent=11 // pred_fallthru
        _
      // Predicated region
      $region17: #{bert_forward.2} parent=11 // pred_check
        %p295 = pneg %p121
      $region18: #{bert_forward.2} parent=11 // pred_check_branch
        %297 = sbr.rel (%p295) target = $region20
      $region19: #{bert_forward.2} parent=11 // pred_region
        _
      $region20: #{bert_forward.2} parent=11 // pred_fallthru
        _
    $region12: #{bert_forward.2} parent=5 // pred_fallthru
      _
    %p298 = scmp.lt.s32.totalorder %s15, 4
    // Predicated region
    $region21: #{bert_forward.2} parent=5 // pred_check
      %p299 = pneg %p298
    $region22: #{bert_forward.2} parent=5 // pred_check_branch
      %301 = sbr.rel (%p299) target = $region24
    $region23: #{bert_forward.2} parent=5 // pred_region
      // Predicated region
      $region25: #{bert_forward.2} parent=23 // pred_check
        %p302 = pneg %p47
      $region26: #{bert_forward.2} parent=23 // pred_check_branch
        %304 = sbr.rel (%p302) target = $region28
      $region27: #{bert_forward.2} parent=23 // pred_region
        %p305 = scmp.lt.s32.totalorder %s22, 1
        %s306 = scalar_select %p305, %s22, 1
        %s307 = smul.addr %s306, 8
        %s308 = scalar_lea.vmem %s0, %s307
      $region28: #{bert_forward.2} parent=23 // pred_fallthru
        _
      // Predicated region
      $region29: #{bert_forward.2} parent=23 // pred_check
        %p309 = pneg %p73
      $region30: #{bert_forward.2} parent=23 // pred_check_branch
        %311 = sbr.rel (%p309) target = $region32
      $region31: #{bert_forward.2} parent=23 // pred_region
        %p312 = scmp.lt.s32.totalorder %s22, 1
        %s313 = scalar_select %p312, %s22, 1
        %s314 = scalar_lea.vmem %s1, %s313
      $region32: #{bert_forward.2} parent=23 // pred_fallthru
        _
      // Predicated region
      $region33: #{bert_forward.2} parent=23 // pred_check
        %p315 = pneg %p141
      $region34: #{bert_forward.2} parent=23 // pred_check_branch
        %317 = sbr.rel (%p315) target = $region36
      $region35: #{bert_forward.2} parent=23 // pred_region
        %p318 = scmp.lt.s32.totalorder %s23, 1
        %s319 = scalar_select %p318, %s23, 1
        %s320 = smul.addr %s319, 4
        %s321 = smul.addr %s320, 4
        %s322 = scalar_lea.vmem %s4, %s321
      $region36: #{bert_forward.2} parent=23 // pred_fallthru
        _
      // Predicated region
      $region37: #{bert_forward.2} parent=23 // pred_check
        %p323 = pneg %p167
      $region38: #{bert_forward.2} parent=23 // pred_check_branch
        %325 = sbr.rel (%p323) target = $region40
      $region39: #{bert_forward.2} parent=23 // pred_region
        %p326 = scmp.lt.s32.totalorder %s23, 1
        %s327 = scalar_select %p326, %s23, 1
        %s328 = smul.addr %s327, 4
        %s329 = smul.addr %s328, 4
        %s330 = scalar_lea.vmem %s5, %s329
      $region40: #{bert_forward.2} parent=23 // pred_fallthru
        _
      // Predicated region
      $region41: #{bert_forward.2} parent=23 // pred_check
        %p331 = pneg %p193
      $region42: #{bert_forward.2} parent=23 // pred_check_branch
        %333 = sbr.rel (%p331) target = $region44
      $region43: #{bert_forward.2} parent=23 // pred_region
        %p334 = scmp.lt.s32.totalorder %s23, 1
        %s335 = scalar_select %p334, %s23, 1
        %s336 = smul.addr %s335, 4
        %s337 = smul.addr %s336, 4
        %s338 = scalar_lea.vmem %s6, %s337
      $region44: #{bert_forward.2} parent=23 // pred_fallthru
        _
      // Predicated region
      $region45: #{bert_forward.2} parent=23 // pred_check
        %p339 = pneg %p219
      $region46: #{bert_forward.2} parent=23 // pred_check_branch
        %341 = sbr.rel (%p339) target = $region48
      $region47: #{bert_forward.2} parent=23 // pred_region
        %p342 = scmp.lt.s32.totalorder %s23, 1
        %s343 = scalar_select %p342, %s23, 1
        %s344 = smul.addr %s343, 16
        %s345 = smul.addr %s344, 4
        %s346 = scalar_lea.vmem %s7, %s345
      $region48: #{bert_forward.2} parent=23 // pred_fallthru
        _
      // Predicated region
      $region49: #{bert_forward.2} parent=23 // pred_check
        %p347 = pneg %p245
      $region50: #{bert_forward.2} parent=23 // pred_check_branch
        %349 = sbr.rel (%p347) target = $region52
      $region51: #{bert_forward.2} parent=23 // pred_region
        %p350 = scmp.lt.s32.totalorder %s23, 1
        %s351 = scalar_select %p350, %s23, 1
        %s352 = smul.addr %s351, 8
        %s353 = scalar_lea.vmem %s8, %s352
      $region52: #{bert_forward.2} parent=23 // pred_fallthru
        _
    $region24: #{bert_forward.2} parent=5 // pred_fallthru
      _
    %p354 = scmp.le.s32.totalorder 1, %s15
    %p355 = scmp.lt.s32.totalorder %s15, 5
    %p356 = pnand %p354, %p355
    %p357 = pneg %p356
    // Predicated region
    $region53: #{bert_forward.2} parent=5 // pred_check
      _
    $region54: #{bert_forward.2} parent=5 // pred_check_branch
      %359 = sbr.rel (%p356) target = $region56
    $region55: #{bert_forward.2} parent=5 // pred_region
      %s360 = ssub.s32 %s15, 1
      %p361 = scmp.lt.s32.totalorder %s24, 1
      %s362 = scalar_select %p361, %s24, 1
      %s363 = smul.addr %s362, 8
      %s364 = scalar_lea.vmem %s0, %s363
      %p365 = pneg %p53
      %p366 = pneg %p50
      %p367 = scmp.lt.s32.totalorder %s24, 1
      %s368 = scalar_select %p367, %s24, 1
      %s369 = scalar_lea.vmem %s1, %s368
      %p370 = pneg %p79
      %p371 = pneg %p76
      %p372 = pneg %p100
      %p373 = pneg %p97
      %p374 = pneg %p121
      %p375 = pneg %p118
      %p376 = scmp.lt.s32.totalorder %s25, 1
      %s377 = scalar_select %p376, %s25, 1
      %s378 = smul.addr %s377, 4
      %s379 = smul.addr %s378, 4
      %s380 = scalar_lea.vmem %s4, %s379
      %p381 = pneg %p147
      %p382 = pneg %p144
      %p383 = scmp.lt.s32.totalorder %s25, 1
      %s384 = scalar_select %p383, %s25, 1
      %s385 = smul.addr %s384, 4
      %s386 = smul.addr %s385, 4
      %s387 = scalar_lea.vmem %s5, %s386
      %p388 = pneg %p173
      %p389 = pneg %p170
      %p390 = scmp.lt.s32.totalorder %s25, 1
      %s391 = scalar_select %p390, %s25, 1
      %s392 = smul.addr %s391, 4
      %s393 = smul.addr %s392, 4
      %s394 = scalar_lea.vmem %s6, %s393
      %p395 = pneg %p199
      %p396 = pneg %p196
      %p397 = scmp.lt.s32.totalorder %s25, 1
      %s398 = scalar_select %p397, %s25, 1
      %s399 = smul.addr %s398, 16
      %s400 = smul.addr %s399, 4
      %s401 = scalar_lea.vmem %s7, %s400
      %p402 = pneg %p225
      %p403 = pneg %p222
      %p404 = scmp.lt.s32.totalorder %s25, 1
      %s405 = scalar_select %p404, %s25, 1
      %s406 = smul.addr %s405, 8
      %s407 = scalar_lea.vmem %s8, %s406
      %p408 = pneg %p251
      %p409 = pneg %p248
      %p410 = pneg %p277
      %p411 = pneg %p274
      %p412 = scmp.lt.s32.totalorder %s24, 1
      %s413 = scalar_select %p412, %s24, 1
      %s414 = smul.addr %s413, 8
      %s415 = scalar_lea.vmem %s9, %s414
      %p416 = scmp.lt.s32.totalorder %s24, 1
      %s417 = scalar_select %p416, %s24, 1
      %s418 = smul.addr %s417, 8
      %s419 = scalar_lea.vmem %s0, %s418
      %p420 = scmp.lt.s32.totalorder %s24, 1
      %s421 = scalar_select %p420, %s24, 1
      %s422 = scalar_lea.vmem %s1, %s421
      %p423 = scmp.lt.s32.totalorder %s25, 1
      %s424 = scalar_select %p423, %s25, 1
      %s425 = smul.addr %s424, 4
      %s426 = smul.addr %s425, 4
      %s427 = scalar_lea.vmem %s4, %s426
      %p428 = scmp.lt.s32.totalorder %s25, 1
      %s429 = scalar_select %p428, %s25, 1
      %s430 = smul.addr %s429, 4
      %s431 = smul.addr %s430, 4
      %s432 = scalar_lea.vmem %s5, %s431
      %p433 = scmp.lt.s32.totalorder %s25, 1
      %s434 = scalar_select %p433, %s25, 1
      %s435 = smul.addr %s434, 4
      %s436 = smul.addr %s435, 4
      %s437 = scalar_lea.vmem %s6, %s436
      %p438 = scmp.lt.s32.totalorder %s25, 1
      %s439 = scalar_select %p438, %s25, 1
      %s440 = smul.addr %s439, 16
      %s441 = smul.addr %s440, 4
      %s442 = scalar_lea.vmem %s7, %s441
      %p443 = scmp.lt.s32.totalorder %s25, 1
      %s444 = scalar_select %p443, %s25, 1
      %s445 = smul.addr %s444, 8
      %s446 = scalar_lea.vmem %s8, %s445
      %p447 = scmp.lt.s32.totalorder %s24, 1
      %s448 = scalar_select %p447, %s24, 1
      %s449 = smul.addr %s448, 8
      %s450 = scalar_lea.vmem %s9, %s449
      %p452 = scmp.eq.s32.totalorder %s25, 0
      // Predicated region
      $region57: #{bert_forward.2} parent=55 // pred_check
        %p453 = pneg %p452
      $region58: #{bert_forward.2} parent=55 // pred_check_branch
        %455 = sbr.rel (%p453) target = $region60
      $region59: #{bert_forward.2} parent=55 // pred_region
        %v456 = vld [vmem:[%s419] sm:$0xff]
        %v457 = vld [vmem:[%s2] sm:$0x1]
        %v458 = vld [vmem:[%s3] sm:$0x1]
        %vm459 = vcmask 261120
        %v460 = vsel %vm459, %v456, 0.0
        %461 = vadd.xlane.f32.xlu0 %v460
        %v462 = vpop.xlane.xlu0 %461
        %v463 = vrcp.pop 32.0
        %v464 = vmul.f32 %v462, %v463
        %v465 = vsub.f32 %v456, %v464
        %v466 = vmul.f32 %v465, %v465
        %v467 = vsel %vm459, %v466, 0.0
        %468 = vadd.xlane.f32.xlu0 %v467
        %v469 = vpop.xlane.xlu0 %468
        %v470 = vrcp.pop 31.0
        %v471 = vmul.f32 %v469, %v470
        %v472 = vrsqrt.pop %v471
        %v473 = vmul.f32 %v471, %v472
        %vm474 = vcmp.eq.f32.partialorder %v471, inf
        %v475 = vsel %vm474, %v471, %v473
        %vm476 = vcmp.eq.f32.partialorder %v471, 0.0
        %v477 = vand.u32 %v471, 2147483648
        %v478 = vsel %vm476, %v477, %v475
        %v479 = vadd.f32 %v478, 1e-06
        %v480 = vrcp.pop %v479
        %v482 = vlaneseq
        %v483 = vshrl.u32 %v482, 7
        %v484 = vsub.s32 0, %v483
        %v485 = vrot.slane %v457, %v484
        %v487 = vmul.f32 %v485, %v465
        %v488 = vmul.f32 %v487, %v480
        %v490 = vlaneseq
        %v491 = vshrl.u32 %v490, 7
        %v492 = vsub.s32 0, %v491
        %v493 = vrot.slane %v458, %v492
        %v495 = vadd.f32 %v488, %v493
        %496 = vst.msk [vmem:[%s450] sm:$0xff] %vm459, %v495
      $region60: #{bert_forward.2} parent=55 // pred_fallthru
        _
      %v497 = vld [vmem:[%s446] sm:$0xff]
      %v498 = vld [vmem:[%s422] sm:$0x1]
      %vm499 = vcmp.gt.s32.totalorder %v498, 0
      %v500 = vsel %vm499, 0.0, -1e+09
      %v502 = vlaneseq
      %v503 = vshrl.u32 %v502, 7
      %v504 = vsub.s32 0, %v503
      %v505 = vrot.slane %v500, %v504
      %v507 = vld [vmem:[%s450] sm:$0xff]
      %vm508 = vcmask 261120
      %v509 = vsel %vm508, %v507, 0.0
      %510 = vadd.xlane.f32.xlu0 %v509
      %v511 = vpop.xlane.xlu0 %510
      %v512 = vrcp.pop 32.0
      %v513 = vmul.f32 %v511, %v512
      %v514 = vsub.f32 %v507, %v513
      %v515 = vmul.f32 %v514, %v514
      %v516 = vsel %vm508, %v515, 0.0
      %517 = vadd.xlane.f32.xlu0 %v516
      %v518 = vpop.xlane.xlu0 %517
      %v519 = vrcp.pop 31.0
      %v520 = vmul.f32 %v518, %v519
      %v521 = vrsqrt.pop %v520
      %v522 = vmul.f32 %v520, %v521
      %vm523 = vcmp.eq.f32.partialorder %v520, inf
      %v524 = vsel %vm523, %v520, %v522
      %vm525 = vcmp.eq.f32.partialorder %v520, 0.0
      %v526 = vand.u32 %v520, 2147483648
      %v527 = vsel %vm525, %v526, %v524
      %v528 = vadd.f32 %v527, 1e-06
      %v529 = vrcp.pop %v528
      %v530 = vlaneseq
      %v531 = vshrl.u32 %v530, 7
      %v532 = vsub.s32 2, %v531
      %v533 = vrot.slane %v497, %v532
      %v534 = vmul.f32 %v533, %v514
      %v535 = vmul.f32 %v534, %v529
      %v536 = vlaneseq
      %v537 = vshrl.u32 %v536, 7
      %v538 = vsub.s32 3, %v537
      %v539 = vrot.slane %v497, %v538
      %v540 = vadd.f32 %v535, %v539
      %v541 = vpack.c.bf16 %v540, %v540
      %v542 = vld [vmem:[%s427] sm:$0xf]
      %v543 = vld [vmem:[%s427 + $0x4] sm:$0xf]
      %v544 = vld [vmem:[%s427 + $0x8] sm:$0xf]
      %v545 = vld [vmem:[%s427 + $0xc] sm:$0xf]
      %v546 = vlaneseq
      %v547 = vshrl.u32 %v546, 7
      %v548 = vsub.s32 0, %v547
      %v549 = vrot.slane %v497, %v548
      %v554 = vunpack.c.l.b16 %v542
      %v555 = vunpack.c.l.b16 %v543
      %v556 = vunpack.c.l.b16 %v544
      %v557 = vunpack.c.l.b16 %v545
      %v558 = vpack.c.b16 %v555, %v554
      %v559 = vpack.c.b16 %v557, %v556
      %v563 = vsel %vm508, %v541, 0
      %565 = vmatprep.subr.bf16.mxu0 0
      %566 = vmatpush1.bf16.msra.mxu0 0
      %567 = vmatprep.subr.bf16.mxu0 0
      %568 = vmatpush1.bf16.msra.mxu0 0
      %569 = vmatprep.subr.bf16.mxu0 0
      %570 = vmatpush1.bf16.msra.mxu0 0
      %571 = vmatprep.subr.bf16.mxu0 0
      %572 = vmatpush1.bf16.msra.mxu0 0
      %573 = vmatprep.subr.bf16.mxu0 0
      %574 = vmatpush1.bf16.msra.mxu0 0
      %575 = vmatprep.subr.bf16.mxu0 0
      %576 = vmatpush1.bf16.msra.mxu0 0
      %577 = vmatprep.subr.bf16.mxu0 0
      %578 = vmatpush1.bf16.msra.mxu0 %v559
      %579 = vmatprep.subr.bf16.mxu0 0
      %580 = vmatpush1.bf16.msra.mxu0 %v558
      %581 = vmatprep.subr.bf16.mxu0 0
      %582 = vmatpush2.bf16.msra.mxu0 0
      %583 = vmatprep.subr.bf16.mxu0 0
      %584 = vmatpush2.bf16.msra.mxu0 0
      %585 = vmatprep.subr.bf16.mxu0 0
      %586 = vmatpush2.bf16.msra.mxu0 0
      %587 = vmatprep.subr.bf16.mxu0 0
      %588 = vmatpush2.bf16.msra.mxu0 0
      %589 = vmatprep.subr.bf16.mxu0 0
      %590 = vmatpush2.bf16.msra.mxu0 0
      %591 = vmatprep.subr.bf16.mxu0 0
      %592 = vmatpush2.bf16.msra.mxu0 0
      %593 = vmatprep.subr.bf16.mxu0 0
      %594 = vmatpush2.bf16.msra.mxu0 0
      %595 = vmatprep.subr.bf16.mxu0 0
      %596 = vmatpush2.bf16.msra.mxu0 0
      %597 = vmatprep.mubr.bf16.mxu0 0
      %598 = vmatmul.mubr.bf16.gmra.mxu0 %v563
      %v599 = vpop.f32.mrf.mxu0
      %v600 = vadd.f32 %v549, %v599
      %v601 = vpop.f32.mrf.mxu0
      %v602 = vpop.f32.mrf.mxu0
      %v603 = vpop.f32.mrf.mxu0
      %604 = vdwg.mxu0
      %v605 = vpack.c.bf16 %v600, %v600
      %607 = vrot.lane.b32.xlu0 %v605, 96
      %v608 = vpop.permute.xlu0 %607
      %vm609 = vcmask 130048
      %v611 = vsel %vm609, %v605, 0
      %v614 = vsel %vm609, %v608, 0
      %616 = vmatprep.subr.bf16.mxu0 0
      %617 = vmatpush1.bf16.xpose.msra.mxu0 0
      %618 = vmatprep.subr.bf16.mxu0 0
      %619 = vmatpush1.bf16.xpose.msra.mxu0 0
      %620 = vmatprep.subr.bf16.mxu0 0
      %621 = vmatpush1.bf16.xpose.msra.mxu0 0
      %622 = vmatprep.subr.bf16.mxu0 0
      %623 = vmatpush1.bf16.xpose.msra.mxu0 0
      %624 = vmatprep.subr.bf16.mxu0 0
      %625 = vmatpush1.bf16.xpose.msra.mxu0 0
      %626 = vmatprep.subr.bf16.mxu0 0
      %627 = vmatpush1.bf16.xpose.msra.mxu0 0
      %628 = vmatprep.subr.bf16.mxu0 0
      %629 = vmatpush1.bf16.xpose.msra.mxu0 0
      %630 = vmatprep.subr.bf16.mxu0 0
      %631 = vmatpush1.bf16.xpose.msra.mxu0 %v614
      %632 = vmatprep.subr.bf16.mxu0 0
      %633 = vmatpush2.bf16.xpose.msra.mxu0 0
      %634 = vmatprep.subr.bf16.mxu0 0
      %635 = vmatpush2.bf16.xpose.msra.mxu0 0
      %636 = vmatprep.subr.bf16.mxu0 0
      %637 = vmatpush2.bf16.xpose.msra.mxu0 0
      %638 = vmatprep.subr.bf16.mxu0 0
      %639 = vmatpush2.bf16.xpose.msra.mxu0 0
      %640 = vmatprep.subr.bf16.mxu0 0
      %641 = vmatpush2.bf16.xpose.msra.mxu0 0
      %642 = vmatprep.subr.bf16.mxu0 0
      %643 = vmatpush2.bf16.xpose.msra.mxu0 0
      %644 = vmatprep.subr.bf16.mxu0 0
      %645 = vmatpush2.bf16.xpose.msra.mxu0 0
      %646 = vmatprep.subr.bf16.mxu0 0
      %647 = vmatpush2.bf16.xpose.msra.mxu0 0
      %648 = vmatprep.mubr.bf16.mxu0 0
      %649 = vmatmul.mubr.bf16.gmra.mxu0 %v611
      %v650 = vpop.f32.mrf.mxu0
      %v651 = vadd.f32 0.0, %v650
      %v652 = vpop.f32.mrf.mxu0
      %v653 = vpop.f32.mrf.mxu0
      %v654 = vpop.f32.mrf.mxu0
      %655 = vdwg.mxu0
      %v656 = vmul.f32 %v651, 0.25
      %v657 = vadd.f32 %v656, %v505
      %vm658 = vcmask 64512
      %v659 = vsel %vm658, %v657, -inf
      %660 = vmax.xlane.f32.xlu0 %v659
      %v661 = vpop.xlane.xlu0 %660
      %v662 = vsub.f32 %v657, %v661
      %v663 = vmul.f32 %v662, 1.442695
      %v664 = vpow.pop %v663
      %v665 = vsel %vm658, %v664, 0.0
      %666 = vadd.xlane.f32.xlu0 %v665
      %v667 = vpop.xlane.xlu0 %666
      %v668 = vrcp.pop %v667
      %v669 = vmul.f32 %v664, %v668
      %v670 = vpack.c.bf16 %v669, %v669
      %671 = vrot.lane.b32.xlu0 %v605, 64
      %v672 = vpop.permute.xlu0 %671
      %v674 = vsel %vm658, %v670, 0
      %vm676 = vcmask 1043456
      %v678 = vsel %vm676, %v672, 0
      %680 = vmatprep.subr.bf16.mxu0 0
      %681 = vmatpush1.bf16.msra.mxu0 0
      %682 = vmatprep.subr.bf16.mxu0 0
      %683 = vmatpush1.bf16.msra.mxu0 0
      %684 = vmatprep.subr.bf16.mxu0 0
      %685 = vmatpush1.bf16.msra.mxu0 0
      %686 = vmatprep.subr.bf16.mxu0 0
      %687 = vmatpush1.bf16.msra.mxu0 0
      %688 = vmatprep.subr.bf16.mxu0 0
      %689 = vmatpush1.bf16.msra.mxu0 0
      %690 = vmatprep.subr.bf16.mxu0 0
      %691 = vmatpush1.bf16.msra.mxu0 0
      %692 = vmatprep.subr.bf16.mxu0 0
      %693 = vmatpush1.bf16.msra.mxu0 0
      %694 = vmatprep.subr.bf16.mxu0 0
      %695 = vmatpush1.bf16.msra.mxu0 %v678
      %696 = vmatprep.subr.bf16.mxu0 0
      %697 = vmatpush2.bf16.msra.mxu0 0
      %698 = vmatprep.subr.bf16.mxu0 0
      %699 = vmatpush2.bf16.msra.mxu0 0
      %700 = vmatprep.subr.bf16.mxu0 0
      %701 = vmatpush2.bf16.msra.mxu0 0
      %702 = vmatprep.subr.bf16.mxu0 0
      %703 = vmatpush2.bf16.msra.mxu0 0
      %704 = vmatprep.subr.bf16.mxu0 0
      %705 = vmatpush2.bf16.msra.mxu0 0
      %706 = vmatprep.subr.bf16.mxu0 0
      %707 = vmatpush2.bf16.msra.mxu0 0
      %708 = vmatprep.subr.bf16.mxu0 0
      %709 = vmatpush2.bf16.msra.mxu0 0
      %710 = vmatprep.subr.bf16.mxu0 0
      %711 = vmatpush2.bf16.msra.mxu0 0
      %712 = vmatprep.mubr.bf16.mxu0 0
      %713 = vmatmul.mubr.bf16.gmra.mxu0 %v674
      %v714 = vpop.f32.mrf.mxu0
      %v715 = vadd.f32 0.0, %v714
      %v716 = vpop.f32.mrf.mxu0
      %v717 = vpop.f32.mrf.mxu0
      %v718 = vpop.f32.mrf.mxu0
      %719 = vdwg.mxu0
      %v720 = vpack.c.bf16 %v715, %v715
      %721 = vrot.lane.b32.xlu0 %v605, 112
      %v722 = vpop.permute.xlu0 %721
      %723 = vrot.lane.b32.xlu0 %v605, 80
      %v724 = vpop.permute.xlu0 %723
      %v726 = vsel %vm609, %v722, 0
      %v729 = vsel %vm609, %v724, 0
      %731 = vmatprep.subr.bf16.mxu0 0
      %732 = vmatpush1.bf16.xpose.msra.mxu0 0
      %733 = vmatprep.subr.bf16.mxu0 0
      %734 = vmatpush1.bf16.xpose.msra.mxu0 0
      %735 = vmatprep.subr.bf16.mxu0 0
      %736 = vmatpush1.bf16.xpose.msra.mxu0 0
      %737 = vmatprep.subr.bf16.mxu0 0
      %738 = vmatpush1.bf16.xpose.msra.mxu0 0
      %739 = vmatprep.subr.bf16.mxu0 0
      %740 = vmatpush1.bf16.xpose.msra.mxu0 0
      %741 = vmatprep.subr.bf16.mxu0 0
      %742 = vmatpush1.bf16.xpose.msra.mxu0 0
      %743 = vmatprep.subr.bf16.mxu0 0
      %744 = vmatpush1.bf16.xpose.msra.mxu0 0
      %745 = vmatprep.subr.bf16.mxu0 0
      %746 = vmatpush1.bf16.xpose.msra.mxu0 %v729
      %747 = vmatprep.subr.bf16.mxu0 0
      %748 = vmatpush2.bf16.xpose.msra.mxu0 0
      %749 = vmatprep.subr.bf16.mxu0 0
      %750 = vmatpush2.bf16.xpose.msra.mxu0 0
      %751 = vmatprep.subr.bf16.mxu0 0
      %752 = vmatpush2.bf16.xpose.msra.mxu0 0
      %753 = vmatprep.subr.bf16.mxu0 0
      %754 = vmatpush2.bf16.xpose.msra.mxu0 0
      %755 = vmatprep.subr.bf16.mxu0 0
      %756 = vmatpush2.bf16.xpose.msra.mxu0 0
      %757 = vmatprep.subr.bf16.mxu0 0
      %758 = vmatpush2.bf16.xpose.msra.mxu0 0
      %759 = vmatprep.subr.bf16.mxu0 0
      %760 = vmatpush2.bf16.xpose.msra.mxu0 0
      %761 = vmatprep.subr.bf16.mxu0 0
      %762 = vmatpush2.bf16.xpose.msra.mxu0 0
      %763 = vmatprep.mubr.bf16.mxu0 0
      %764 = vmatmul.mubr.bf16.gmra.mxu0 %v726
      %v765 = vpop.f32.mrf.mxu0
      %v766 = vadd.f32 0.0, %v765
      %v767 = vpop.f32.mrf.mxu0
      %v768 = vpop.f32.mrf.mxu0
      %v769 = vpop.f32.mrf.mxu0
      %770 = vdwg.mxu0
      %v771 = vmul.f32 %v766, 0.25
      %v772 = vadd.f32 %v771, %v505
      %v773 = vsel %vm658, %v772, -inf
      %774 = vmax.xlane.f32.xlu0 %v773
      %v775 = vpop.xlane.xlu0 %774
      %v776 = vsub.f32 %v772, %v775
      %v777 = vmul.f32 %v776, 1.442695
      %v778 = vpow.pop %v777
      %v779 = vsel %vm658, %v778, 0.0
      %780 = vadd.xlane.f32.xlu0 %v779
      %v781 = vpop.xlane.xlu0 %780
      %v782 = vrcp.pop %v781
      %v783 = vmul.f32 %v778, %v782
      %v784 = vpack.c.bf16 %v783, %v783
      %785 = vrot.lane.b32.xlu0 %v605, 48
      %v786 = vpop.permute.xlu0 %785
      %v788 = vsel %vm658, %v784, 0
      %v791 = vsel %vm676, %v786, 0
      %793 = vmatprep.subr.bf16.mxu0 0
      %794 = vmatpush1.bf16.msra.mxu0 0
      %795 = vmatprep.subr.bf16.mxu0 0
      %796 = vmatpush1.bf16.msra.mxu0 0
      %797 = vmatprep.subr.bf16.mxu0 0
      %798 = vmatpush1.bf16.msra.mxu0 0
      %799 = vmatprep.subr.bf16.mxu0 0
      %800 = vmatpush1.bf16.msra.mxu0 0
      %801 = vmatprep.subr.bf16.mxu0 0
      %802 = vmatpush1.bf16.msra.mxu0 0
      %803 = vmatprep.subr.bf16.mxu0 0
      %804 = vmatpush1.bf16.msra.mxu0 0
      %805 = vmatprep.subr.bf16.mxu0 0
      %806 = vmatpush1.bf16.msra.mxu0 0
      %807 = vmatprep.subr.bf16.mxu0 0
      %808 = vmatpush1.bf16.msra.mxu0 %v791
      %809 = vmatprep.subr.bf16.mxu0 0
      %810 = vmatpush2.bf16.msra.mxu0 0
      %811 = vmatprep.subr.bf16.mxu0 0
      %812 = vmatpush2.bf16.msra.mxu0 0
      %813 = vmatprep.subr.bf16.mxu0 0
      %814 = vmatpush2.bf16.msra.mxu0 0
      %815 = vmatprep.subr.bf16.mxu0 0
      %816 = vmatpush2.bf16.msra.mxu0 0
      %817 = vmatprep.subr.bf16.mxu0 0
      %818 = vmatpush2.bf16.msra.mxu0 0
      %819 = vmatprep.subr.bf16.mxu0 0
      %820 = vmatpush2.bf16.msra.mxu0 0
      %821 = vmatprep.subr.bf16.mxu0 0
      %822 = vmatpush2.bf16.msra.mxu0 0
      %823 = vmatprep.subr.bf16.mxu0 0
      %824 = vmatpush2.bf16.msra.mxu0 0
      %825 = vmatprep.mubr.bf16.mxu0 0
      %826 = vmatmul.mubr.bf16.gmra.mxu0 %v788
      %v827 = vpop.f32.mrf.mxu0
      %v828 = vadd.f32 0.0, %v827
      %v829 = vpop.f32.mrf.mxu0
      %v830 = vpop.f32.mrf.mxu0
      %v831 = vpop.f32.mrf.mxu0
      %832 = vdwg.mxu0
      %v833 = vpack.c.bf16 %v828, %v828
      %835 = vrot.lane.b32.xlu0 %v833, 16
      %v836 = vpop.permute.xlu0 %835
      %v839 = vsel %vm609, %v720, %v836
      %v840 = vld [vmem:[%s432] sm:$0xf]
      %v841 = vld [vmem:[%s432 + $0x4] sm:$0xf]
      %v842 = vld [vmem:[%s432 + $0x8] sm:$0xf]
      %v843 = vld [vmem:[%s432 + $0xc] sm:$0xf]
      %v844 = vlaneseq
      %v845 = vshrl.u32 %v844, 7
      %v846 = vsub.s32 1, %v845
      %v847 = vrot.slane %v497, %v846
      %v852 = vunpack.c.l.b16 %v840
      %v853 = vunpack.c.l.b16 %v841
      %v854 = vunpack.c.l.b16 %v842
      %v855 = vunpack.c.l.b16 %v843
      %v856 = vpack.c.b16 %v853, %v852
      %v857 = vpack.c.b16 %v855, %v854
      %v860 = vsel %vm508, %v839, 0
      %862 = vmatprep.subr.bf16.mxu0 0
      %863 = vmatpush1.bf16.msra.mxu0 0
      %864 = vmatprep.subr.bf16.mxu0 0
      %865 = vmatpush1.bf16.msra.mxu0 0
      %866 = vmatprep.subr.bf16.mxu0 0
      %867 = vmatpush1.bf16.msra.mxu0 0
      %868 = vmatprep.subr.bf16.mxu0 0
      %869 = vmatpush1.bf16.msra.mxu0 0
      %870 = vmatprep.subr.bf16.mxu0 0
      %871 = vmatpush1.bf16.msra.mxu0 0
      %872 = vmatprep.subr.bf16.mxu0 0
      %873 = vmatpush1.bf16.msra.mxu0 0
      %874 = vmatprep.subr.bf16.mxu0 0
      %875 = vmatpush1.bf16.msra.mxu0 %v857
      %876 = vmatprep.subr.bf16.mxu0 0
      %877 = vmatpush1.bf16.msra.mxu0 %v856
      %878 = vmatprep.subr.bf16.mxu0 0
      %879 = vmatpush2.bf16.msra.mxu0 0
      %880 = vmatprep.subr.bf16.mxu0 0
      %881 = vmatpush2.bf16.msra.mxu0 0
      %882 = vmatprep.subr.bf16.mxu0 0
      %883 = vmatpush2.bf16.msra.mxu0 0
      %884 = vmatprep.subr.bf16.mxu0 0
      %885 = vmatpush2.bf16.msra.mxu0 0
      %886 = vmatprep.subr.bf16.mxu0 0
      %887 = vmatpush2.bf16.msra.mxu0 0
      %888 = vmatprep.subr.bf16.mxu0 0
      %889 = vmatpush2.bf16.msra.mxu0 0
      %890 = vmatprep.subr.bf16.mxu0 0
      %891 = vmatpush2.bf16.msra.mxu0 0
      %892 = vmatprep.subr.bf16.mxu0 0
      %893 = vmatpush2.bf16.msra.mxu0 0
      %894 = vmatprep.mubr.bf16.mxu0 0
      %895 = vmatmul.mubr.bf16.gmra.mxu0 %v860
      %v896 = vpop.f32.mrf.mxu0
      %v897 = vadd.f32 %v847, %v896
      %v898 = vpop.f32.mrf.mxu0
      %v899 = vpop.f32.mrf.mxu0
      %v900 = vpop.f32.mrf.mxu0
      %901 = vdwg.mxu0
      %v902 = vadd.f32 %v507, %v897
      %v903 = vsel %vm508, %v902, 0.0
      %904 = vadd.xlane.f32.xlu0 %v903
      %v905 = vpop.xlane.xlu0 %904
      %v906 = vmul.f32 %v905, %v512
      %v907 = vsub.f32 %v902, %v906
      %v908 = vmul.f32 %v907, %v907
      %v909 = vsel %vm508, %v908, 0.0
      %910 = vadd.xlane.f32.xlu0 %v909
      %v911 = vpop.xlane.xlu0 %910
      %v912 = vmul.f32 %v911, %v519
      %v913 = vrsqrt.pop %v912
      %v914 = vmul.f32 %v912, %v913
      %vm915 = vcmp.eq.f32.partialorder %v912, inf
      %v916 = vsel %vm915, %v912, %v914
      %vm917 = vcmp.eq.f32.partialorder %v912, 0.0
      %v918 = vand.u32 %v912, 2147483648
      %v919 = vsel %vm917, %v918, %v916
      %v920 = vadd.f32 %v919, 1e-06
      %v921 = vrcp.pop %v920
      %v922 = vlaneseq
      %v923 = vshrl.u32 %v922, 7
      %v924 = vsub.s32 4, %v923
      %v925 = vrot.slane %v497, %v924
      %v926 = vmul.f32 %v925, %v907
      %v927 = vmul.f32 %v926, %v921
      %v928 = vlaneseq
      %v929 = vshrl.u32 %v928, 7
      %v930 = vsub.s32 5, %v929
      %v931 = vrot.slane %v497, %v930
      %v932 = vadd.f32 %v927, %v931
      %v933 = vpack.c.bf16 %v932, %v932
      %v934 = vld [vmem:[%s437] sm:$0xf]
      %v935 = vld [vmem:[%s437 + $0x4] sm:$0xf]
      %v936 = vld [vmem:[%s437 + $0x8] sm:$0xf]
      %v937 = vld [vmem:[%s437 + $0xc] sm:$0xf]
      %v938 = vlaneseq
      %v939 = vshrl.u32 %v938, 7
      %v940 = vsub.s32 6, %v939
      %v941 = vrot.slane %v497, %v940
      %v946 = vunpack.c.l.b16 %v934
      %v947 = vunpack.c.l.b16 %v935
      %v948 = vunpack.c.l.b16 %v936
      %v949 = vunpack.c.l.b16 %v937
      %v950 = vpack.c.b16 %v947, %v946
      %v951 = vpack.c.b16 %v949, %v948
      %v955 = vsel %vm508, %v933, 0
      %957 = vmatprep.subr.bf16.mxu0 0
      %958 = vmatpush1.bf16.msra.mxu0 0
      %959 = vmatprep.subr.bf16.mxu0 0
      %960 = vmatpush1.bf16.msra.mxu0 0
      %961 = vmatprep.subr.bf16.mxu0 0
      %962 = vmatpush1.bf16.msra.mxu0 0
      %963 = vmatprep.subr.bf16.mxu0 0
      %964 = vmatpush1.bf16.msra.mxu0 0
      %965 = vmatprep.subr.bf16.mxu0 0
      %966 = vmatpush1.bf16.msra.mxu0 0
      %967 = vmatprep.subr.bf16.mxu0 0
      %968 = vmatpush1.bf16.msra.mxu0 0
      %969 = vmatprep.subr.bf16.mxu0 0
      %970 = vmatpush1.bf16.msra.mxu0 %v951
      %971 = vmatprep.subr.bf16.mxu0 0
      %972 = vmatpush1.bf16.msra.mxu0 %v950
      %973 = vmatprep.subr.bf16.mxu0 0
      %974 = vmatpush2.bf16.msra.mxu0 0
      %975 = vmatprep.subr.bf16.mxu0 0
      %976 = vmatpush2.bf16.msra.mxu0 0
      %977 = vmatprep.subr.bf16.mxu0 0
      %978 = vmatpush2.bf16.msra.mxu0 0
      %979 = vmatprep.subr.bf16.mxu0 0
      %980 = vmatpush2.bf16.msra.mxu0 0
      %981 = vmatprep.subr.bf16.mxu0 0
      %982 = vmatpush2.bf16.msra.mxu0 0
      %983 = vmatprep.subr.bf16.mxu0 0
      %984 = vmatpush2.bf16.msra.mxu0 0
      %985 = vmatprep.subr.bf16.mxu0 0
      %986 = vmatpush2.bf16.msra.mxu0 0
      %987 = vmatprep.subr.bf16.mxu0 0
      %988 = vmatpush2.bf16.msra.mxu0 0
      %989 = vmatprep.mubr.bf16.mxu0 0
      %990 = vmatmul.mubr.bf16.gmra.mxu0 %v955
      %v991 = vpop.f32.mrf.mxu0
      %v992 = vadd.f32 %v941, %v991
      %v993 = vpop.f32.mrf.mxu0
      %v994 = vpop.f32.mrf.mxu0
      %v995 = vpop.f32.mrf.mxu0
      %996 = vdwg.mxu0
      %v997 = vmul.f32 %v992, 0.5
      %v998 = vmul.f32 %v992, 0.044715
      %v999 = vmul.f32 %v998, %v992
      %v1000 = vmul.f32 %v999, %v992
      %v1001 = vadd.f32 %v992, %v1000
      %v1002 = vmul.f32 %v1001, 0.7978846
      %v1003 = vtanh.pop %v1002
      %v1004 = vadd.f32 %v1003, 1.0
      %v1005 = vmul.f32 %v997, %v1004
      %v1006 = vpack.c.bf16 %v1005, %v1005
      %v1007 = vld [vmem:[%s442] sm:$0xf]
      %v1008 = vld [vmem:[%s442 + $0x4] sm:$0xf]
      %v1009 = vld [vmem:[%s442 + $0x8] sm:$0xf]
      %v1010 = vld [vmem:[%s442 + $0xc] sm:$0xf]
      %v1011 = vld [vmem:[%s442 + $0x10] sm:$0xf]
      %v1012 = vld [vmem:[%s442 + $0x14] sm:$0xf]
      %v1013 = vld [vmem:[%s442 + $0x18] sm:$0xf]
      %v1014 = vld [vmem:[%s442 + $0x1c] sm:$0xf]
      %v1015 = vld [vmem:[%s442 + $0x20] sm:$0xf]
      %v1016 = vld [vmem:[%s442 + $0x24] sm:$0xf]
      %v1017 = vld [vmem:[%s442 + $0x28] sm:$0xf]
      %v1018 = vld [vmem:[%s442 + $0x2c] sm:$0xf]
      %v1019 = vld [vmem:[%s442 + $0x30] sm:$0xf]
      %v1020 = vld [vmem:[%s442 + $0x34] sm:$0xf]
      %v1021 = vld [vmem:[%s442 + $0x38] sm:$0xf]
      %v1022 = vld [vmem:[%s442 + $0x3c] sm:$0xf]
      %v1023 = vlaneseq
      %v1024 = vshrl.u32 %v1023, 7
      %v1025 = vsub.s32 7, %v1024
      %v1026 = vrot.slane %v497, %v1025
      %v1043 = vunpack.c.l.b16 %v1007
      %v1044 = vunpack.c.l.b16 %v1008
      %v1045 = vunpack.c.l.b16 %v1009
      %v1046 = vunpack.c.l.b16 %v1010
      %v1047 = vunpack.c.l.b16 %v1011
      %v1048 = vunpack.c.l.b16 %v1012
      %v1049 = vunpack.c.l.b16 %v1013
      %v1050 = vunpack.c.l.b16 %v1014
      %v1051 = vunpack.c.l.b16 %v1015
      %v1052 = vunpack.c.l.b16 %v1016
      %v1053 = vunpack.c.l.b16 %v1017
      %v1054 = vunpack.c.l.b16 %v1018
      %v1055 = vunpack.c.l.b16 %v1019
      %v1056 = vunpack.c.l.b16 %v1020
      %v1057 = vunpack.c.l.b16 %v1021
      %v1058 = vunpack.c.l.b16 %v1022
      %v1059 = vpack.c.b16 %v1044, %v1043
      %v1060 = vpack.c.b16 %v1046, %v1045
      %v1061 = vpack.c.b16 %v1048, %v1047
      %v1062 = vpack.c.b16 %v1050, %v1049
      %v1063 = vpack.c.b16 %v1052, %v1051
      %v1064 = vpack.c.b16 %v1054, %v1053
      %v1065 = vpack.c.b16 %v1056, %v1055
      %v1066 = vpack.c.b16 %v1058, %v1057
      %1075 = vmatprep.subr.bf16.mxu0 0
      %1076 = vmatpush1.bf16.msra.mxu0 %v1066
      %1077 = vmatprep.subr.bf16.mxu0 0
      %1078 = vmatpush1.bf16.msra.mxu0 %v1065
      %1079 = vmatprep.subr.bf16.mxu0 0
      %1080 = vmatpush1.bf16.msra.mxu0 %v1064
      %1081 = vmatprep.subr.bf16.mxu0 0
      %1082 = vmatpush1.bf16.msra.mxu0 %v1063
      %1083 = vmatprep.subr.bf16.mxu0 0
      %1084 = vmatpush1.bf16.msra.mxu0 %v1062
      %1085 = vmatprep.subr.bf16.mxu0 0
      %1086 = vmatpush1.bf16.msra.mxu0 %v1061
      %1087 = vmatprep.subr.bf16.mxu0 0
      %1088 = vmatpush1.bf16.msra.mxu0 %v1060
      %1089 = vmatprep.subr.bf16.mxu0 0
      %1090 = vmatpush1.bf16.msra.mxu0 %v1059
      %1091 = vmatprep.subr.bf16.mxu0 0
      %1092 = vmatpush2.bf16.msra.mxu0 0
      %1093 = vmatprep.subr.bf16.mxu0 0
      %1094 = vmatpush2.bf16.msra.mxu0 0
      %1095 = vmatprep.subr.bf16.mxu0 0
      %1096 = vmatpush2.bf16.msra.mxu0 0
      %1097 = vmatprep.subr.bf16.mxu0 0
      %1098 = vmatpush2.bf16.msra.mxu0 0
      %1099 = vmatprep.subr.bf16.mxu0 0
      %1100 = vmatpush2.bf16.msra.mxu0 0
      %1101 = vmatprep.subr.bf16.mxu0 0
      %1102 = vmatpush2.bf16.msra.mxu0 0
      %1103 = vmatprep.subr.bf16.mxu0 0
      %1104 = vmatpush2.bf16.msra.mxu0 0
      %1105 = vmatprep.subr.bf16.mxu0 0
      %1106 = vmatpush2.bf16.msra.mxu0 0
      %1107 = vmatprep.mubr.bf16.mxu0 0
      %1108 = vmatmul.mubr.bf16.gmra.mxu0 %v1006
      %v1109 = vpop.f32.mrf.mxu0
      %v1110 = vadd.f32 %v1026, %v1109
      %v1111 = vpop.f32.mrf.mxu0
      %v1112 = vpop.f32.mrf.mxu0
      %v1113 = vpop.f32.mrf.mxu0
      %1114 = vdwg.mxu0
      %v1115 = vadd.f32 %v902, %v1110
      %1116 = vst.msk [vmem:[%s450] sm:$0xff] %vm508, %v1115
      %p1117 = scmp.lt.s32.totalorder %s24, 1
      %s1118 = scalar_select %p1117, %s24, 1
      %s1119 = smul.addr %s1118, 8
      %s1120 = scalar_lea.vmem %s9, %s1119
      // Predicated region
      $region61: #{bert_forward.2} parent=55 // pred_check
        %p1121 = pneg %p274
      $region62: #{bert_forward.2} parent=55 // pred_check_branch
        %1123 = sbr.rel (%p1121) target = $region64
      $region63: #{bert_forward.2} parent=55 // pred_region
        _
      $region64: #{bert_forward.2} parent=55 // pred_fallthru
        _
    $region56: #{bert_forward.2} parent=5 // pred_fallthru
      _
    %p1124 = scmp.le.s32.totalorder 2, %s15
    // Predicated region
    $region65: #{bert_forward.2} parent=5 // pred_check
      %p1125 = pneg %p1124
    $region66: #{bert_forward.2} parent=5 // pred_check_branch
      %1127 = sbr.rel (%p1125) target = $region68
    $region67: #{bert_forward.2} parent=5 // pred_region
      %s1128 = ssub.s32 %s15, 2
      // Predicated region
      $region69: #{bert_forward.2} parent=67 // pred_check
        %p1129 = pneg %p280
      $region70: #{bert_forward.2} parent=67 // pred_check_branch
        %1131 = sbr.rel (%p1129) target = $region72
      $region71: #{bert_forward.2} parent=67 // pred_region
        %p1132 = scmp.lt.s32.totalorder %s26, 1
        %s1133 = scalar_select %p1132, %s26, 1
        %s1134 = smul.addr %s1133, 8
        %s1135 = scalar_lea.vmem %s9, %s1134
      $region72: #{bert_forward.2} parent=67 // pred_fallthru
        _
    $region68: #{bert_forward.2} parent=5 // pred_fallthru
      _
  $region6: #{bert_forward.2} parent=0 // loop_footer
    %s19 = sadd.s32 1, %s15
  $region7: #{bert_forward.2} parent=0 // loop_footer_branch
    %14 = sbr.rel target = $region3
  $region8: #{bert_forward.2} parent=0 // loop_exit
    _

</llo_original>
